<compile_context>
chip_gen: v7x
topology: tpu7x:2x2x1
jax: 0.10.0
libtpu: 0.0.40
codegen_flags: <defaults>
</compile_context>

<pallas_src>
import jax
import jax.numpy as jnp
from jax import lax
from jax.experimental import pallas as pl
from jax.experimental.pallas import tpu as pltpu


# ----------------------------------------------------------------------------
# small helpers
# ----------------------------------------------------------------------------
def _largest_divisor_at_most(n, cap):
    cap = max(1, min(n, int(cap)))
    for d in range(cap, 0, -1):
        if n % d == 0:
            return d
    return 1


def _vmem_capacity_bytes():
    # Generation-aware VMEM sizing (128 MiB on v5e/v6e, 64 MiB per core on v7x); conservative
    # fallback if the query is unavailable.
    try:
        return int(pltpu.get_tpu_info().vmem_capacity_bytes)
    except Exception:  # pragma: no cover - defensive fallback
        return 64 << 20


def _compiler_params(est_bytes, cap_bytes, semantics):
    limit = int(min(max(est_bytes * 5 // 4 + (4 << 20), 16 << 20), cap_bytes * 9 // 10))
    return pltpu.CompilerParams(dimension_semantics=semantics, vmem_limit_bytes=limit)


# ----------------------------------------------------------------------------
# Kernel 1: nearest-neighbour 2x upsample (interpolate-only path, conv=False)
# ----------------------------------------------------------------------------
def _upsample2x_kernel(x_ref, o_ref):
    # x_ref: (1, TH, W, C)        input row tile
    # o_ref: (1, TH, 2, W, 2*C)   output view tile: (row, row-phase, col, (col-phase, C))
    c = x_ref.shape[-1]
    x = x_ref[0]                                   # (TH, W, C)
    # Four direct stores (no lane concat): reuse the already-loaded vregs and keep the kernel
    # purely on the vst/DMA path that bounds it.
    o_ref[0, :, 0, :, 0:c] = x
    o_ref[0, :, 0, :, c:2 * c] = x
    o_ref[0, :, 1, :, 0:c] = x
    o_ref[0, :, 1, :, c:2 * c] = x


def upsample2x_nearest_nhwc(x):
    N, H, W, C = x.shape
    isz = jnp.dtype(x.dtype).itemsize
    cap = _vmem_capacity_bytes()
    budget = cap * 3 // 4
    per_row = 10 * W * C * isz                     # dbl-buffered input row + 4 output rows
    fit_rows = max(1, budget // per_row)
    # Per-grid-step overhead is ~0.35us: only split further once a step moves more than ~8 MiB
    # of HBM traffic (2 steps already give double-buffered overlap).
    step_rows = max(1, (8 << 20) // max(5 * W * C * isz, 1))
    th = _largest_divisor_at_most(H, min(fit_rows, step_rows))
    est = per_row * th

    out_view = pl.pallas_call(
        _upsample2x_kernel,
        out_shape=jax.ShapeDtypeStruct((N, H, 2, W, 2 * C), x.dtype),
        grid=(N, H // th),
        in_specs=[pl.BlockSpec((1, th, W, C), lambda n, r: (n, r, 0, 0))],
        out_specs=pl.BlockSpec((1, th, 2, W, 2 * C), lambda n, r: (n, r, 0, 0, 0)),
        compiler_params=_compiler_params(est, cap, ("parallel", "parallel")),
    )(x)
    # free reshape (row-major order is identical) back to dense NHWC
    return out_view.reshape(N, 2 * H, 2 * W, C)


# ----------------------------------------------------------------------------
# Kernel 2: fused nearest 2x upsample + 3x3 conv (padding=1) + bias  (conv=True)
# ----------------------------------------------------------------------------
def _phase_conv_weights(w_hwio):
    """Combine 3x3 HWIO weights into sub-pixel phase form (2_b, 2_a, 4*Cin, Cout).

    Output phase (a, b) of 'nearest-2x upsample then 3x3 conv, pad=1' only touches input
    pixels at row offsets {a-1, a} and column offsets {b-1, b}; the 3x3 taps that collapse
    onto input tap (u, v) are pre-summed, and (u, v, ci) is flattened into one K = 4*Cin
    contraction so each phase is a single MXU matmul (better MXU fill than K = 2*Cin).
    """
    cin, cout = w_hwio.shape[2], w_hwio.shape[3]
    w_eff = jnp.zeros((2, 2, 2, 2, cin, cout), w_hwio.dtype)   # [b, a, u, v, ci, co]
    for a in range(2):
        for b in range(2):
            for kh in range(3):
                for kw in range(3):
                    u = (a + kh - 1) // 2 + 1 - a
                    v = (b + kw - 1) // 2 + 1 - b
                    w_eff = w_eff.at[b, a, u, v].add(w_hwio[kh, kw])
    return w_eff.reshape(2, 2, 4 * cin, cout)


def _conv_kernel_full(xpad_ref, w_ref, b_ref, o_ref):
    # Computes both column phases per grid step (used when Cout is small / not 128-tileable).
    # xpad_ref: (1, Hp, Wp, Cin)     zero-padded input (resident across row tiles)
    # w_ref   : (2, 2, 4*Cin, Cout)  phase weights [b, a, k, co] (resident)
    # b_ref   : (1, Cout)            bias (f32)
    # o_ref   : (1, TH, 2, W, 2*Cout) output row tile: (row, row-phase, col, (col-phase, Cout))
    th, w_sz = o_ref.shape[1], o_ref.shape[3]
    row0 = pl.multiple_of(pl.program_id(1) * th, th)
    slab = xpad_ref[0, pl.ds(row0, th + 2), :, :]          # (TH+2, Wp, Cin) incl. row halo
    c0 = slab[:, 0:w_sz, :]
    c1 = slab[:, 1:1 + w_sz, :]
    c2 = slab[:, 2:2 + w_sz, :]
    xcat = (jnp.concatenate([c0, c1], axis=-1),            # column taps of phase b=0
            jnp.concatenate([c1, c2], axis=-1))            # column taps of phase b=1
    bias = b_ref[...].astype(jnp.float32)                  # (1, Cout)
    for a in range(2):            # output row phase
        outs = []
        for b in range(2):        # output column phase
            x4 = jnp.concatenate([xcat[b][a:a + th], xcat[b][a + 1:a + 1 + th]],
                                 axis=-1).reshape(th * w_sz, -1)       # (TH*W, 4*Cin)
            acc = jnp.dot(x4, w_ref[b, a], preferred_element_type=jnp.float32)
            outs.append((acc + bias).reshape(th, w_sz, -1).astype(o_ref.dtype))
        # single full-width (lane-dense, unmasked) store per output row phase
        o_ref[0, :, a, :, :] = jnp.concatenate(outs, axis=-1)


def _make_conv_kernel_split(nb_c):
    # One column phase + one Cout tile per grid step; grid axis 2 enumerates (phase, cout-tile).
    def kernel(xpad_ref, w_ref, b_ref, o_ref):
        # xpad_ref: (1, Hp, Wp, Cin); w_ref: (1, 2, 4*Cin, TCout) for this step's column phase
        # b_ref: (1, TCout); o_ref: (1, TH, 2, W, TCout)
        th, w_sz = o_ref.shape[1], o_ref.shape[3]
        is_odd_col = (pl.program_id(2) // nb_c) == 1        # dynamic column phase b
        row0 = pl.multiple_of(pl.program_id(1) * th, th)
        slab = xpad_ref[0, pl.ds(row0, th + 2), :, :]       # (TH+2, Wp, Cin)
        c0 = slab[:, 0:w_sz, :]
        c1 = slab[:, 1:1 + w_sz, :]
        c2 = slab[:, 2:2 + w_sz, :]
        # column taps (v=0, v=1) of the current phase, chosen with a cheap VPU select
        xcat = jnp.concatenate([jnp.where(is_odd_col, c1, c0),
                                jnp.where(is_odd_col, c2, c1)], axis=-1)   # (TH+2, W, 2*Cin)
        bias = b_ref[...].astype(jnp.float32)               # (1, TCout)
        for a in range(2):        # output row phase
            x4 = jnp.concatenate([xcat[a:a + th], xcat[a + 1:a + 1 + th]],
                                 axis=-1).reshape(th * w_sz, -1)           # (TH*W, 4*Cin)
            acc = jnp.dot(x4, w_ref[0, a], preferred_element_type=jnp.float32)
            # full-block-width store: lane-dense and unmasked since TCout % 128 == 0
            o_ref[0, :, a, :, :] = (acc + bias).reshape(th, w_sz, -1).astype(o_ref.dtype)
    return kernel


def upsample2x_conv_nhwc(x_pad, w_phase, bias_f32, out_dtype):
    N, Hp, Wp, Cin = x_pad.shape
    H, W = Hp - 2, Wp - 2
    Cout = w_phase.shape[-1]
    isz = jnp.dtype(x_pad.dtype).itemsize
    wsz = jnp.dtype(w_phase.dtype).itemsize
    osz = jnp.dtype(out_dtype).itemsize
    cap = _vmem_capacity_bytes()
    budget = cap * 3 // 4

    def _plan(tco_or_none):
        if tco_or_none is None:
            oc, w_elems = 2 * Cout, 16 * Cin * Cout            # both phases, full weights
        else:
            oc, w_elems = tco_or_none, 8 * Cin * tco_or_none   # one phase, one Cout tile
        # double-buffered residents (padded image + weight block) + per-output-row terms
        # TODO(synk): single-buffer the resident refs (pl.Buffered(1) / pl.ANY + one-time DMA)
        # to halve this fixed term once that path is validated on all generations.
        fixed = 2 * Hp * Wp * Cin * isz + 2 * w_elems * wsz
        per_row = W * (12 * Cin * isz + 4 * oc * osz + 2 * oc * 4)
        return fixed, per_row

    # Cout tiling (third grid axis): keeps the weight/output blocks bounded so the kernel fits
    # v7x's 64 MiB VMEM at real diffusion channel counts, and makes every store a full block.
    split = (Cout % 128 == 0) and (Cout >= 256)
    tco = None
    if split:
        tco = 128
        for cand in range(Cout, 127, -128):        # prefer the largest tile that fits
            if Cout % cand == 0:
                f, p = _plan(cand)
                if f + p <= budget:
                    tco = cand
                    break

    fixed, per_row = _plan(tco)
    fit_rows = max(1, (budget - fixed) // per_row) if budget > fixed else 1
    th = _largest_divisor_at_most(H, fit_rows)
    est = fixed + per_row * th
    bias2d = bias_f32.reshape(1, Cout)
    # TODO(synk): for very large H*W*Cin (resident padded image >> VMEM) switch the input to
    # memory_space=pl.ANY with a manually double-buffered halo DMA.

    if split:
        nb_c = Cout // tco
        kernel = _make_conv_kernel_split(nb_c)
        grid = (N, H // th, 2 * Cout // tco)
        in_specs = [
            pl.BlockSpec((1, Hp, Wp, Cin), lambda n, r, c: (n, 0, 0, 0)),         # resident
            pl.BlockSpec((1, 2, 4 * Cin, tco),
                         lambda n, r, c: (c // nb_c, 0, 0, c % nb_c)),            # phase tile
            pl.BlockSpec((1, tco), lambda n, r, c: (0, c % nb_c)),
        ]
        out_spec = pl.BlockSpec((1, th, 2, W, tco), lambda n, r, c: (n, r, 0, 0, c))
        semantics = ("parallel", "parallel", "parallel")
    else:
        kernel = _conv_kernel_full
        grid = (N, H // th)
        in_specs = [
            pl.BlockSpec((1, Hp, Wp, Cin), lambda n, r: (n, 0, 0, 0)),            # resident
            pl.BlockSpec((2, 2, 4 * Cin, Cout), lambda n, r: (0, 0, 0, 0)),       # resident
            pl.BlockSpec((1, Cout), lambda n, r: (0, 0)),
        ]
        out_spec = pl.BlockSpec((1, th, 2, W, 2 * Cout), lambda n, r: (n, r, 0, 0, 0))
        semantics = ("parallel", "parallel")

    out_view = pl.pallas_call(
        kernel,
        out_shape=jax.ShapeDtypeStruct((N, H, 2, W, 2 * Cout), out_dtype),
        grid=grid,
        in_specs=in_specs,
        out_specs=out_spec,
        compiler_params=_compiler_params(est, cap, semantics),
    )(x_pad, w_phase, bias2d)
    # free reshape (row-major order is identical) back to dense NHWC
    return out_view.reshape(N, 2 * H, 2 * W, Cout)


# ----------------------------------------------------------------------------
# Module-equivalent wrapper (forward pass of `Upsample`)
# ----------------------------------------------------------------------------
class UpsamplePallas:
    def __init__(self, channels, out_channels=None, interpolate=True, conv=False,
                 mode="nearest", *, key=None):
        assert mode == "nearest", "only 'nearest' mode implemented"
        self.channels = channels
        self.out_channels = out_channels or channels
        self.interpolate = interpolate   # like the PyTorch module, forward() ignores this flag
        self.mode = mode
        self.conv = conv
        self.w_hwio = None
        self.bias = None
        self.w_phase = None
        if conv:
            key = key if key is not None else jax.random.PRNGKey(0)
            kw, kb = jax.random.split(key)
            # deterministic synthetic init (HWIO); PyTorch shape is (Cout, Cin, 3, 3)
            self.w_hwio = 0.1 * jax.random.normal(
                kw, (3, 3, self.channels, self.out_channels), jnp.float32)
            self.bias = 0.1 * jax.random.normal(kb, (self.out_channels,), jnp.float32)
            self.w_phase = _phase_conv_weights(self.w_hwio)   # (2, 2, 4*Cin, Cout), f32

    def __call__(self, x_nchw, output_size=None):
        assert x_nchw.shape[1] == self.channels
        # TODO(synk): F.interpolate(size=output_size) path not implemented; scale_factor=2 only.
        assert output_size is None, "only scale_factor=2 supported"
        dtype = x_nchw.dtype
        # PyTorch round-trips bf16 -> f32 -> bf16 around interpolate; nearest-neighbour copy is
        # value-exact, so we skip the extra HBM passes and keep the input dtype end to end.
        x = jnp.transpose(x_nchw, (0, 2, 3, 1))          # NCHW -> NHWC (channels on lanes)
        if self.conv:
            # 1-pixel zero pad in H/W so every row tile reads its halo with plain blocked
            # indexing (one cheap pass over the small input; fuses with the transpose under jit)
            x = jnp.pad(x, ((0, 0), (1, 1), (1, 1), (0, 0)))
            y = upsample2x_conv_nhwc(
                x, self.w_phase.astype(dtype), self.bias, dtype)   # bf16 stays bf16 on the MXU
        else:
            y = upsample2x_nearest_nhwc(x)
        return jnp.transpose(y, (0, 3, 1, 2))            # NHWC -> NCHW


# ----------------------------------------------------------------------------
# Demo / self-check
# ----------------------------------------------------------------------------
if __name__ == "__main__":
    key = jax.random.PRNGKey(0)
    k1, k2, k3, k4 = jax.random.split(key, 4)

    def ref_upsample_conv(x_nchw, w_hwio, bias):
        x_nhwc = jnp.transpose(x_nchw, (0, 2, 3, 1))
        up = jnp.repeat(jnp.repeat(x_nhwc, 2, axis=1), 2, axis=2)
        out = lax.conv_general_dilated(
            up, w_hwio, window_strides=(1, 1), padding="SAME",
            dimension_numbers=("NHWC", "HWIO", "NHWC")) + bias
        return jnp.transpose(out, (0, 3, 1, 2))

    # --- test 1: conv=True, small channels (non-split kernel), Cin != Cout ---
    N, C, H, W = 2, 4, 16, 16
    COUT = 8
    x = jax.random.normal(k1, (N, C, H, W), jnp.float32)
    mod = UpsamplePallas(channels=C, out_channels=COUT, conv=True, key=k2)
    y = jax.block_until_ready(mod(x))
    assert y.shape == (N, COUT, 2 * H, 2 * W), y.shape
    ref1 = ref_upsample_conv(x, mod.w_hwio, mod.bias)
    assert float(jnp.max(jnp.abs(y - ref1))) < 2e-3, "conv path mismatch"

    # --- test 2: interpolate-only path (conv=False) ---
    mod_nc = UpsamplePallas(channels=C, conv=False)
    y2 = jax.block_until_ready(mod_nc(x))
    assert y2.shape == (N, C, 2 * H, 2 * W), y2.shape
    x_nhwc = jnp.transpose(x, (0, 2, 3, 1))
    up_ref = jnp.transpose(
        jnp.repeat(jnp.repeat(x_nhwc, 2, axis=1), 2, axis=2), (0, 3, 1, 2))
    assert float(jnp.max(jnp.abs(y2 - up_ref))) == 0.0, "upsample path mismatch"

    # --- test 3: conv=True with Cout a multiple of 128 (exercises the Cout-tiled kernel) ---
    N3, C3, H3, W3, COUT3 = 1, 16, 8, 8, 256
    x3 = jax.random.normal(k3, (N3, C3, H3, W3), jnp.float32)
    mod3 = UpsamplePallas(channels=C3, out_channels=COUT3, conv=True, key=k4)
    y3 = jax.block_until_ready(mod3(x3))
    assert y3.shape == (N3, COUT3, 2 * H3, 2 * W3), y3.shape
    ref3 = ref_upsample_conv(x3, mod3.w_hwio, mod3.bias)
    assert float(jnp.max(jnp.abs(y3 - ref3))) < 5e-3, "cout-tiled conv path mismatch"

    print("KERNEL_OK")
</pallas_src>

<mosaic_0001>
module attributes {stable_mosaic.version = 11 : i64} {
  func.func @_conv_kernel_full(%arg0: i32, %arg1: i32, %arg2: memref<1x18x18x4xf32, #tpu.memory_space<vmem>>, %arg3: memref<2x2x16x8xf32, #tpu.memory_space<vmem>>, %arg4: memref<1x8xf32, #tpu.memory_space<vmem>>, %arg5: memref<1x16x2x16x16xf32, #tpu.memory_space<vmem>>) attributes {dimension_semantics = [#tpu.dimension_semantics<parallel>, #tpu.dimension_semantics<parallel>], iteration_bounds = array<i64: 2, 1>, scalar_prefetch = 0 : i64, scratch_operands = 0 : i64, tpu.core_type = #tpu.core_type<tc>, window_params = [{transform_indices = @transform_0, window_bounds = array<i64: 1, 18, 18, 4>}, {pipeline_mode = #tpu.pipeline_mode<synchronous>, transform_indices = @transform_1, window_bounds = array<i64: 2, 2, 16, 8>}, {pipeline_mode = #tpu.pipeline_mode<synchronous>, transform_indices = @transform_2, window_bounds = array<i64: 1, 8>}, {transform_indices = @transform_3, window_bounds = array<i64: 1, 16, 2, 16, 16>}]} {
    %c16_i32 = arith.constant 16 : i32
    %0 = arith.muli %arg1, %c16_i32 : i32
    %1 = tpu.assume_multiple %0, 16 : i32
    %c0 = arith.constant 0 : index
    %2 = arith.index_cast %1 : i32 to index
    %c0_0 = arith.constant 0 : index
    %c0_1 = arith.constant 0 : index
    %3 = vector.load %arg2[%c0, %2, %c0_0, %c0_1] : memref<1x18x18x4xf32, #tpu.memory_space<vmem>>, vector<1x18x18x4xf32>
    %4 = vector.shape_cast %3 : vector<1x18x18x4xf32> to vector<18x18x4xf32>
    %5 = vector.extract_strided_slice %4 {offsets = [0, 0, 0], sizes = [18, 16, 4], strides = [1, 1, 1]} : vector<18x18x4xf32> to vector<18x16x4xf32>
    %6 = vector.extract_strided_slice %4 {offsets = [0, 1, 0], sizes = [18, 16, 4], strides = [1, 1, 1]} : vector<18x18x4xf32> to vector<18x16x4xf32>
    %7 = vector.extract_strided_slice %4 {offsets = [0, 2, 0], sizes = [18, 16, 4], strides = [1, 1, 1]} : vector<18x18x4xf32> to vector<18x16x4xf32>
    %8 = tpu.concatenate %5, %6 in 2 : vector<18x16x4xf32>, vector<18x16x4xf32> -> vector<18x16x8xf32>
    %9 = tpu.concatenate %6, %7 in 2 : vector<18x16x4xf32>, vector<18x16x4xf32> -> vector<18x16x8xf32>
    %c0_2 = arith.constant 0 : index
    %c0_3 = arith.constant 0 : index
    %10 = vector.load %arg4[%c0_2, %c0_3] : memref<1x8xf32, #tpu.memory_space<vmem>>, vector<1x8xf32>
    %11 = vector.extract_strided_slice %8 {offsets = [0, 0, 0], sizes = [16, 16, 8], strides = [1, 1, 1]} : vector<18x16x8xf32> to vector<16x16x8xf32>
    %12 = vector.extract_strided_slice %8 {offsets = [1, 0, 0], sizes = [16, 16, 8], strides = [1, 1, 1]} : vector<18x16x8xf32> to vector<16x16x8xf32>
    %13 = tpu.concatenate %11, %12 in 2 : vector<16x16x8xf32>, vector<16x16x8xf32> -> vector<16x16x16xf32>
    %14 = vector.shape_cast %13 : vector<16x16x16xf32> to vector<256x16xf32>
    %c0_4 = arith.constant 0 : index
    %c0_5 = arith.constant 0 : index
    %c0_6 = arith.constant 0 : index
    %c0_7 = arith.constant 0 : index
    %15 = vector.load %arg3[%c0_4, %c0_5, %c0_6, %c0_7] : memref<2x2x16x8xf32, #tpu.memory_space<vmem>>, vector<1x1x16x8xf32>
    %16 = vector.shape_cast %15 : vector<1x1x16x8xf32> to vector<16x8xf32>
    %cst = arith.constant dense<0.000000e+00> : vector<256x8xf32>
    %17 = tpu.matmul %14, %16, %cst {dimension_numbers = #tpu.dot_dimension_numbers<[1], [0], [0], [1], [0, 0, 1, 1], [], []>} : vector<256x16xf32>, vector<16x8xf32>, vector<256x8xf32> -> vector<256x8xf32>
    %18 = vector.broadcast %10 : vector<1x8xf32> to vector<256x8xf32>
    %19 = arith.addf %17, %18 : vector<256x8xf32>
    %20 = vector.shape_cast %19 : vector<256x8xf32> to vector<16x16x8xf32>
    %21 = vector.extract_strided_slice %9 {offsets = [0, 0, 0], sizes = [16, 16, 8], strides = [1, 1, 1]} : vector<18x16x8xf32> to vector<16x16x8xf32>
    %22 = vector.extract_strided_slice %9 {offsets = [1, 0, 0], sizes = [16, 16, 8], strides = [1, 1, 1]} : vector<18x16x8xf32> to vector<16x16x8xf32>
    %23 = tpu.concatenate %21, %22 in 2 : vector<16x16x8xf32>, vector<16x16x8xf32> -> vector<16x16x16xf32>
    %24 = vector.shape_cast %23 : vector<16x16x16xf32> to vector<256x16xf32>
    %c1 = arith.constant 1 : index
    %c0_8 = arith.constant 0 : index
    %c0_9 = arith.constant 0 : index
    %c0_10 = arith.constant 0 : index
    %25 = vector.load %arg3[%c1, %c0_8, %c0_9, %c0_10] : memref<2x2x16x8xf32, #tpu.memory_space<vmem>>, vector<1x1x16x8xf32>
    %26 = vector.shape_cast %25 : vector<1x1x16x8xf32> to vector<16x8xf32>
    %cst_11 = arith.constant dense<0.000000e+00> : vector<256x8xf32>
    %27 = tpu.matmul %24, %26, %cst_11 {dimension_numbers = #tpu.dot_dimension_numbers<[1], [0], [0], [1], [0, 0, 1, 1], [], []>} : vector<256x16xf32>, vector<16x8xf32>, vector<256x8xf32> -> vector<256x8xf32>
    %28 = vector.broadcast %10 : vector<1x8xf32> to vector<256x8xf32>
    %29 = arith.addf %27, %28 : vector<256x8xf32>
    %30 = vector.shape_cast %29 : vector<256x8xf32> to vector<16x16x8xf32>
    %31 = tpu.concatenate %20, %30 in 2 : vector<16x16x8xf32>, vector<16x16x8xf32> -> vector<16x16x16xf32>
    %c0_12 = arith.constant 0 : index
    %c0_13 = arith.constant 0 : index
    %c0_14 = arith.constant 0 : index
    %c0_15 = arith.constant 0 : index
    %c0_16 = arith.constant 0 : index
    %32 = vector.load %arg5[%c0_12, %c0_13, %c0_14, %c0_15, %c0_16] : memref<1x16x2x16x16xf32, #tpu.memory_space<vmem>>, vector<1x16x1x16x16xf32>
    %33 = vector.shape_cast %32 : vector<1x16x1x16x16xf32> to vector<16x16x16xf32>
    %34 = vector.shape_cast %31 : vector<16x16x16xf32> to vector<1x16x1x16x16xf32>
    tpu.vector_store %arg5[%c0_12, %c0_13, %c0_14, %c0_15, %c0_16], %34 {strides = array<i32>} : memref<1x16x2x16x16xf32, #tpu.memory_space<vmem>>, vector<1x16x1x16x16xf32>,
    %35 = vector.extract_strided_slice %8 {offsets = [1, 0, 0], sizes = [16, 16, 8], strides = [1, 1, 1]} : vector<18x16x8xf32> to vector<16x16x8xf32>
    %36 = vector.extract_strided_slice %8 {offsets = [2, 0, 0], sizes = [16, 16, 8], strides = [1, 1, 1]} : vector<18x16x8xf32> to vector<16x16x8xf32>
    %37 = tpu.concatenate %35, %36 in 2 : vector<16x16x8xf32>, vector<16x16x8xf32> -> vector<16x16x16xf32>
    %38 = vector.shape_cast %37 : vector<16x16x16xf32> to vector<256x16xf32>
    %c0_17 = arith.constant 0 : index
    %c1_18 = arith.constant 1 : index
    %c0_19 = arith.constant 0 : index
    %c0_20 = arith.constant 0 : index
    %39 = vector.load %arg3[%c0_17, %c1_18, %c0_19, %c0_20] : memref<2x2x16x8xf32, #tpu.memory_space<vmem>>, vector<1x1x16x8xf32>
    %40 = vector.shape_cast %39 : vector<1x1x16x8xf32> to vector<16x8xf32>
    %cst_21 = arith.constant dense<0.000000e+00> : vector<256x8xf32>
    %41 = tpu.matmul %38, %40, %cst_21 {dimension_numbers = #tpu.dot_dimension_numbers<[1], [0], [0], [1], [0, 0, 1, 1], [], []>} : vector<256x16xf32>, vector<16x8xf32>, vector<256x8xf32> -> vector<256x8xf32>
    %42 = vector.broadcast %10 : vector<1x8xf32> to vector<256x8xf32>
    %43 = arith.addf %41, %42 : vector<256x8xf32>
    %44 = vector.shape_cast %43 : vector<256x8xf32> to vector<16x16x8xf32>
    %45 = vector.extract_strided_slice %9 {offsets = [1, 0, 0], sizes = [16, 16, 8], strides = [1, 1, 1]} : vector<18x16x8xf32> to vector<16x16x8xf32>
    %46 = vector.extract_strided_slice %9 {offsets = [2, 0, 0], sizes = [16, 16, 8], strides = [1, 1, 1]} : vector<18x16x8xf32> to vector<16x16x8xf32>
    %47 = tpu.concatenate %45, %46 in 2 : vector<16x16x8xf32>, vector<16x16x8xf32> -> vector<16x16x16xf32>
    %48 = vector.shape_cast %47 : vector<16x16x16xf32> to vector<256x16xf32>
    %c1_22 = arith.constant 1 : index
    %c1_23 = arith.constant 1 : index
    %c0_24 = arith.constant 0 : index
    %c0_25 = arith.constant 0 : index
    %49 = vector.load %arg3[%c1_22, %c1_23, %c0_24, %c0_25] : memref<2x2x16x8xf32, #tpu.memory_space<vmem>>, vector<1x1x16x8xf32>
    %50 = vector.shape_cast %49 : vector<1x1x16x8xf32> to vector<16x8xf32>
    %cst_26 = arith.constant dense<0.000000e+00> : vector<256x8xf32>
    %51 = tpu.matmul %48, %50, %cst_26 {dimension_numbers = #tpu.dot_dimension_numbers<[1], [0], [0], [1], [0, 0, 1, 1], [], []>} : vector<256x16xf32>, vector<16x8xf32>, vector<256x8xf32> -> vector<256x8xf32>
    %52 = vector.broadcast %10 : vector<1x8xf32> to vector<256x8xf32>
    %53 = arith.addf %51, %52 : vector<256x8xf32>
    %54 = vector.shape_cast %53 : vector<256x8xf32> to vector<16x16x8xf32>
    %55 = tpu.concatenate %44, %54 in 2 : vector<16x16x8xf32>, vector<16x16x8xf32> -> vector<16x16x16xf32>
    %c0_27 = arith.constant 0 : index
    %c0_28 = arith.constant 0 : index
    %c1_29 = arith.constant 1 : index
    %c0_30 = arith.constant 0 : index
    %c0_31 = arith.constant 0 : index
    %56 = vector.load %arg5[%c0_27, %c0_28, %c1_29, %c0_30, %c0_31] : memref<1x16x2x16x16xf32, #tpu.memory_space<vmem>>, vector<1x16x1x16x16xf32>
    %57 = vector.shape_cast %56 : vector<1x16x1x16x16xf32> to vector<16x16x16xf32>
    %58 = vector.shape_cast %55 : vector<16x16x16xf32> to vector<1x16x1x16x16xf32>
    tpu.vector_store %arg5[%c0_27, %c0_28, %c1_29, %c0_30, %c0_31], %58 {strides = array<i32>} : memref<1x16x2x16x16xf32, #tpu.memory_space<vmem>>, vector<1x16x1x16x16xf32>,
    return
  }
  func.func @transform_0(%arg0: i32, %arg1: i32) -> (i32, i32, i32, i32) {
    %c0_i32 = arith.constant 0 : i32
    %c0_i32_0 = arith.constant 0 : i32
    %c0_i32_1 = arith.constant 0 : i32
    %c0_i32_2 = arith.constant 0 : i32
    return %arg0, %c0_i32, %c0_i32_0, %c0_i32_1 : i32, i32, i32, i32
  }
  func.func @transform_1(%arg0: i32, %arg1: i32) -> (i32, i32, i32, i32) {
    %c0_i32 = arith.constant 0 : i32
    %c0_i32_0 = arith.constant 0 : i32
    %c0_i32_1 = arith.constant 0 : i32
    %c0_i32_2 = arith.constant 0 : i32
    %c0_i32_3 = arith.constant 0 : i32
    return %c0_i32, %c0_i32_0, %c0_i32_1, %c0_i32_2 : i32, i32, i32, i32
  }
  func.func @transform_2(%arg0: i32, %arg1: i32) -> (i32, i32) {
    %c0_i32 = arith.constant 0 : i32
    %c0_i32_0 = arith.constant 0 : i32
    %c0_i32_1 = arith.constant 0 : i32
    return %c0_i32, %c0_i32_0 : i32, i32
  }
  func.func @transform_3(%arg0: i32, %arg1: i32) -> (i32, i32, i32, i32, i32) {
    %c0_i32 = arith.constant 0 : i32
    %c0_i32_0 = arith.constant 0 : i32
    %c0_i32_1 = arith.constant 0 : i32
    %c0_i32_2 = arith.constant 0 : i32
    return %arg0, %arg1, %c0_i32, %c0_i32_0, %c0_i32_1 : i32, i32, i32, i32, i32
  }
}

</mosaic_0001>

<llo_original>
// kernel: tpu_custom_call.1
$region0: #{tpu_custom_call.1}
  #allocation0 [shape = 'u32[]', space=smem, size = 0x4, offset = 0x4, fixed_abs, tag = 'smem constant byte address 0x4 - core index']
  #allocation1 [shape = 'u32[144,128]{1,0:T(1,128)}', space=vmem, size = 0x12000, scoped, tag = 'internal scratch']
  %s0 = inlined_call_operand.vmem [shape: f32[2,18,18,4], index: 0, kind: input, shape index: {}]
  %s1 = inlined_call_operand.vmem [shape: f32[2,2,16,8], index: 1, kind: input, shape index: {}]
  %s2 = inlined_call_operand.vmem [shape: f32[1,8], index: 2, kind: input, shape index: {}]
  %s3 = inlined_call_operand.hbm [shape: f32[2,16,2,16,16], index: 3, kind: output, shape index: {}]
  %s4 = sld [smem:[#allocation0]]
  $region45: #{tpu_custom_call.1} parent=0
    _
  %s6 = ssub.s32 1, %s4
  %s7 = scalar_select 0, %s6, %s4
  $region1: #{tpu_custom_call.1} parent=0
    #allocation2 [shape = 'u8[524288]{0}', space=vmem, size = 0x80000, scoped, tag = 'output window, operand 0']
    #allocation3 [shape = 's32[2]{0}', space=sflag, size = 0x8, scoped, tag = 'scoped memory for tpu_custom_call.1']
    %8 = vsyncpa [#allocation3], 0
    %s9 = scalar_lea.sflag [#allocation3], 1
    %10 = vsyncpa %s9, 0
    loop: start=0, step=1, limit=4
    $region2: #{tpu_custom_call.1} parent=1 // loop_pre_header
      _
    $region3: #{tpu_custom_call.1} parent=1 // loop_header
      %s12 = sphi 0, %s16
      %p13 = scmp.ge.s32.totalorder %s12, 4
      %s19 = sphi 0, %s31
      %s20 = sphi 0, %s27
      %s21 = sphi 0, %s19
      %s22 = sphi 0, %s20
      %s23 = sphi 0, %s21
      %s24 = sphi 0, %s22
      %s34 = sphi 0, %s36
      %s37 = sphi 0, %s34
      %s38 = sphi 0, %s37
      %s54 = sphi 0, %s38
      %s58 = sphi 0, %s58
      %s60 = sphi 0, %s58
      %s61 = sphi 0, %s60
      %s75 = sphi 0, %s61
      %s79 = sphi 0, %s79
      %s81 = sphi 0, %s79
      %s82 = sphi 0, %s81
      %s96 = sphi 0, %s82
      %s104 = sphi 0, %s106
      %s107 = sphi 0, %s104
      %s108 = sphi 0, %s107
      %s124 = sphi 0, %s108
    $region4: #{tpu_custom_call.1} parent=1 // loop_header_branch
      %15 = sbr.rel (%p13) target = $region8
    $region5: #{tpu_custom_call.1} parent=1 // loop_body
      %s17 = ssub.s32 %s12, 1
      %s18 = ssub.s32 %s12, 2
      %s25 = sadd.s32 1, %s20
      %p26 = scmp.ge.s32.totalorder %s25, 1
      %s27 = scalar_select %p26, 0, %s25
      %s28 = sadd.s32 1, %s19
      %s29 = scalar_select %p26, %s28, %s19
      %p30 = scmp.ge.s32.totalorder %s29, 2
      %s31 = scalar_select %p30, 0, %s29
      %s32 = ssub.s32 %s19, %s31
      %p33 = scmp.eq.s32.totalorder %s32, 0
      %s35 = sadd.s32 %s34, 1
      %s36 = scalar_select %p33, %s34, %s35
      %p39 = pneg %p33
      %p40 = scmp.eq.s32.totalorder %s12, 1
      %p41 = por %p39, %p40
      %p42 = scmp.ne.s32.totalorder %s34, %s37
      %p43 = scmp.eq.s32.totalorder %s12, 0
      %p44 = por %p42, %p43
      %p45 = scmp.ne.s32.totalorder %s34, %s37
      %p46 = scmp.eq.s32.totalorder %s17, 1
      %p47 = por %p45, %p46
      %p48 = scmp.ne.s32.totalorder %s37, %s38
      %p49 = scmp.eq.s32.totalorder %s17, 0
      %p50 = por %p48, %p49
      %p51 = scmp.ne.s32.totalorder %s37, %s38
      %p52 = scmp.eq.s32.totalorder %s18, 1
      %p53 = por %p51, %p52
      %p55 = scmp.ne.s32.totalorder %s38, %s54
      %p56 = scmp.eq.s32.totalorder %s18, 0
      %p57 = por %p55, %p56
      %s59 = sadd.s32 %s58, 1
      %p62 = scmp.eq.s32.totalorder %s12, 1
      %p63 = scmp.ne.s32.totalorder %s58, %s60
      %p64 = scmp.eq.s32.totalorder %s12, 0
      %p65 = por %p63, %p64
      %p66 = scmp.ne.s32.totalorder %s58, %s60
      %p67 = scmp.eq.s32.totalorder %s17, 1
      %p68 = por %p66, %p67
      %p69 = scmp.ne.s32.totalorder %s60, %s61
      %p70 = scmp.eq.s32.totalorder %s17, 0
      %p71 = por %p69, %p70
      %p72 = scmp.ne.s32.totalorder %s60, %s61
      %p73 = scmp.eq.s32.totalorder %s18, 1
      %p74 = por %p72, %p73
      %p76 = scmp.ne.s32.totalorder %s61, %s75
      %p77 = scmp.eq.s32.totalorder %s18, 0
      %p78 = por %p76, %p77
      %s80 = sadd.s32 %s79, 1
      %p83 = scmp.eq.s32.totalorder %s12, 1
      %p84 = scmp.ne.s32.totalorder %s79, %s81
      %p85 = scmp.eq.s32.totalorder %s12, 0
      %p86 = por %p84, %p85
      %p87 = scmp.ne.s32.totalorder %s79, %s81
      %p88 = scmp.eq.s32.totalorder %s17, 1
      %p89 = por %p87, %p88
      %p90 = scmp.ne.s32.totalorder %s81, %s82
      %p91 = scmp.eq.s32.totalorder %s17, 0
      %p92 = por %p90, %p91
      %p93 = scmp.ne.s32.totalorder %s81, %s82
      %p94 = scmp.eq.s32.totalorder %s18, 1
      %p95 = por %p93, %p94
      %p97 = scmp.ne.s32.totalorder %s82, %s96
      %p98 = scmp.eq.s32.totalorder %s18, 0
      %p99 = por %p97, %p98
      %s100 = ssub.s32 %s19, %s31
      %s101 = ssub.s32 %s20, %s27
      %s102 = sor.u32 %s100, %s101
      %p103 = scmp.eq.s32.totalorder %s102, 0
      %s105 = sadd.s32 %s104, 1
      %s106 = scalar_select %p103, %s104, %s105
      %p109 = pneg %p103
      %p110 = scmp.eq.s32.totalorder %s12, 1
      %p111 = por %p109, %p110
      %p112 = scmp.ne.s32.totalorder %s104, %s107
      %p113 = scmp.eq.s32.totalorder %s12, 0
      %p114 = por %p112, %p113
      %p115 = scmp.ne.s32.totalorder %s104, %s107
      %p116 = scmp.eq.s32.totalorder %s17, 1
      %p117 = por %p115, %p116
      %p118 = scmp.ne.s32.totalorder %s107, %s108
      %p119 = scmp.eq.s32.totalorder %s17, 0
      %p120 = por %p118, %p119
      %p121 = scmp.ne.s32.totalorder %s107, %s108
      %p122 = scmp.eq.s32.totalorder %s18, 1
      %p123 = por %p121, %p122
      %p125 = scmp.ne.s32.totalorder %s108, %s124
      %p126 = scmp.eq.s32.totalorder %s18, 0
      %p127 = por %p125, %p126
      %p128 = scmp.le.s32.totalorder 1, %s12
      %p129 = scmp.lt.s32.totalorder %s12, 3
      %p130 = pnand %p128, %p129
      %p131 = pneg %p130
      // Predicated region
      $region9: #{tpu_custom_call.1} parent=5 // pred_check
        _
      $region10: #{tpu_custom_call.1} parent=5 // pred_check_branch
        %133 = sbr.rel (%p130) target = $region12
      $region11: #{tpu_custom_call.1} parent=5 // pred_region
        %s134 = ssub.s32 %s12, 1
        // Predicated region
        $region13: #{tpu_custom_call.1} parent=11 // pred_check
          %p135 = pneg %p71
        $region14: #{tpu_custom_call.1} parent=11 // pred_check_branch
          %137 = sbr.rel (%p135) target = $region16
        $region15: #{tpu_custom_call.1} parent=11 // pred_region
          _
        $region16: #{tpu_custom_call.1} parent=11 // pred_fallthru
          _
        // Predicated region
        $region17: #{tpu_custom_call.1} parent=11 // pred_check
          %p138 = pneg %p92
        $region18: #{tpu_custom_call.1} parent=11 // pred_check_branch
          %140 = sbr.rel (%p138) target = $region20
        $region19: #{tpu_custom_call.1} parent=11 // pred_region
          _
        $region20: #{tpu_custom_call.1} parent=11 // pred_fallthru
          _
      $region12: #{tpu_custom_call.1} parent=5 // pred_fallthru
        _
      %p141 = scmp.lt.s32.totalorder %s12, 2
      // Predicated region
      $region21: #{tpu_custom_call.1} parent=5 // pred_check
        %p142 = pneg %p141
      $region22: #{tpu_custom_call.1} parent=5 // pred_check_branch
        %144 = sbr.rel (%p142) target = $region24
      $region23: #{tpu_custom_call.1} parent=5 // pred_region
        // Predicated region
        $region25: #{tpu_custom_call.1} parent=23 // pred_check
          %p145 = pneg %p44
        $region26: #{tpu_custom_call.1} parent=23 // pred_check_branch
          %147 = sbr.rel (%p145) target = $region28
        $region27: #{tpu_custom_call.1} parent=23 // pred_region
          %p148 = scmp.lt.s32.totalorder %s19, 1
          %s149 = scalar_select %p148, %s19, 1
          %s150 = smul.addr %s149, 54
          %s151 = smul.addr %s150, 8
          %s152 = scalar_lea.vmem %s0, %s151
        $region28: #{tpu_custom_call.1} parent=23 // pred_fallthru
          _
      $region24: #{tpu_custom_call.1} parent=5 // pred_fallthru
        _
      %p153 = scmp.le.s32.totalorder 1, %s12
      %p154 = scmp.lt.s32.totalorder %s12, 3
      %p155 = pnand %p153, %p154
      %p156 = pneg %p155
      // Predicated region
      $region29: #{tpu_custom_call.1} parent=5 // pred_check
        _
      $region30: #{tpu_custom_call.1} parent=5 // pred_check_branch
        %158 = sbr.rel (%p155) target = $region32
      $region31: #{tpu_custom_call.1} parent=5 // pred_region
        %s159 = ssub.s32 %s12, 1
        %p160 = scmp.lt.s32.totalorder %s21, 1
        %s161 = scalar_select %p160, %s21, 1
        %s162 = smul.addr %s161, 54
        %s163 = smul.addr %s162, 8
        %s164 = scalar_lea.vmem %s0, %s163
        %p165 = pneg %p50
        %p166 = pneg %p47
        %p167 = pneg %p71
        %p168 = pneg %p68
        %p169 = pneg %p92
        %p170 = pneg %p89
        %p171 = pneg %p120
        %p172 = pneg %p117
        %s173 = sand.u32 %s107, 1
        %s174 = scalar_lea.sflag [#allocation3], %s173
        %s175 = sand.u32 %s107, 1
        %s176 = smul.addr %s175, 512
        %s177 = scalar_lea.vmem [#allocation2], %s176
        %p178 = scmp.lt.s32.totalorder %s21, 1
        %s179 = scalar_select %p178, %s21, 1
        %s180 = smul.addr %s179, 54
        %s181 = smul.addr %s180, 8
        %s182 = scalar_lea.vmem %s0, %s181
        %s183 = smul.u32 16, %s22
        %s184 = smul.u32 %s22, 16
        %s185 = smul.u32 %s184, 24
        %s186 = scalar_lea.vmem %s182, %s185
        %v187 = vld [vmem:[%s186] sm:$0xff]
        %v188 = vld [vmem:[%s186 + $0x8] sm:$0xff]
        %v189 = vld [vmem:[%s186 + $0x10] sm:$0x3]
        %v190 = vld [vmem:[%s186 + $0x18] sm:$0xff]
        %v191 = vld [vmem:[%s186 + $0x20] sm:$0xff]
        %v192 = vld [vmem:[%s186 + $0x28] sm:$0x3]
        %v193 = vld [vmem:[%s186 + $0x30] sm:$0xff]
        %v194 = vld [vmem:[%s186 + $0x38] sm:$0xff]
        %v195 = vld [vmem:[%s186 + $0x40] sm:$0x3]
        %v196 = vld [vmem:[%s186 + $0x48] sm:$0xff]
        %v197 = vld [vmem:[%s186 + $0x50] sm:$0xff]
        %v198 = vld [vmem:[%s186 + $0x58] sm:$0x3]
        %v199 = vld [vmem:[%s186 + $0x60] sm:$0xff]
        %v200 = vld [vmem:[%s186 + $0x68] sm:$0xff]
        %v201 = vld [vmem:[%s186 + $0x70] sm:$0x3]
        %v202 = vld [vmem:[%s186 + $0x78] sm:$0xff]
        %v203 = vld [vmem:[%s186 + $0x80] sm:$0xff]
        %v204 = vld [vmem:[%s186 + $0x88] sm:$0x3]
        %v205 = vld [vmem:[%s186 + $0x90] sm:$0xff]
        %v206 = vld [vmem:[%s186 + $0x98] sm:$0xff]
        %v207 = vld [vmem:[%s186 + $0xa0] sm:$0x3]
        %v208 = vld [vmem:[%s186 + $0xa8] sm:$0xff]
        %v209 = vld [vmem:[%s186 + $0xb0] sm:$0xff]
        %v210 = vld [vmem:[%s186 + $0xb8] sm:$0x3]
        %v211 = vld [vmem:[%s186 + $0xc0] sm:$0xff]
        %v212 = vld [vmem:[%s186 + $0xc8] sm:$0xff]
        %v213 = vld [vmem:[%s186 + $0xd0] sm:$0x3]
        %v214 = vld [vmem:[%s186 + $0xd8] sm:$0xff]
        %v215 = vld [vmem:[%s186 + $0xe0] sm:$0xff]
        %v216 = vld [vmem:[%s186 + $0xe8] sm:$0x3]
        %v217 = vld [vmem:[%s186 + $0xf0] sm:$0xff]
        %v218 = vld [vmem:[%s186 + $0xf8] sm:$0xff]
        %v219 = vld [vmem:[%s186 + $0x100] sm:$0x3]
        %v220 = vld [vmem:[%s186 + $0x108] sm:$0xff]
        %v221 = vld [vmem:[%s186 + $0x110] sm:$0xff]
        %v222 = vld [vmem:[%s186 + $0x118] sm:$0x3]
        %v223 = vld [vmem:[%s186 + $0x120] sm:$0xff]
        %v224 = vld [vmem:[%s186 + $0x128] sm:$0xff]
        %v225 = vld [vmem:[%s186 + $0x130] sm:$0x3]
        %v226 = vld [vmem:[%s186 + $0x138] sm:$0xff]
        %v227 = vld [vmem:[%s186 + $0x140] sm:$0xff]
        %v228 = vld [vmem:[%s186 + $0x148] sm:$0x3]
        %v229 = vld [vmem:[%s186 + $0x150] sm:$0xff]
        %v230 = vld [vmem:[%s186 + $0x158] sm:$0xff]
        %v231 = vld [vmem:[%s186 + $0x160] sm:$0x3]
        %v232 = vld [vmem:[%s186 + $0x168] sm:$0xff]
        %v233 = vld [vmem:[%s186 + $0x170] sm:$0xff]
        %v234 = vld [vmem:[%s186 + $0x178] sm:$0x3]
        %v235 = vld [vmem:[%s186 + $0x180] sm:$0xff]
        %v236 = vld [vmem:[%s186 + $0x188] sm:$0xff]
        %v237 = vld [vmem:[%s186 + $0x190] sm:$0x3]
        %v238 = vld [vmem:[%s186 + $0x198] sm:$0xff]
        %v239 = vld [vmem:[%s186 + $0x1a0] sm:$0xff]
        %v240 = vld [vmem:[%s186 + $0x1a8] sm:$0x3]
        %vm295 = vcmask 1046528
        %v296 = vrot.slane %v187, 1
        %v297 = vrot.slane %v188, 1
        %v298 = vsel %vm295, %v296, %v297
        %v299 = vrot.slane %v189, 1
        %v300 = vsel %vm295, %v297, %v299
        %v301 = vrot.slane %v190, 1
        %v302 = vrot.slane %v191, 1
        %v303 = vsel %vm295, %v301, %v302
        %v304 = vrot.slane %v192, 1
        %v305 = vsel %vm295, %v302, %v304
        %v306 = vrot.slane %v193, 1
        %v307 = vrot.slane %v194, 1
        %v308 = vsel %vm295, %v306, %v307
        %v309 = vrot.slane %v195, 1
        %v310 = vsel %vm295, %v307, %v309
        %v311 = vrot.slane %v196, 1
        %v312 = vrot.slane %v197, 1
        %v313 = vsel %vm295, %v311, %v312
        %v314 = vrot.slane %v198, 1
        %v315 = vsel %vm295, %v312, %v314
        %v316 = vrot.slane %v199, 1
        %v317 = vrot.slane %v200, 1
        %v318 = vsel %vm295, %v316, %v317
        %v319 = vrot.slane %v201, 1
        %v320 = vsel %vm295, %v317, %v319
        %v321 = vrot.slane %v202, 1
        %v322 = vrot.slane %v203, 1
        %v323 = vsel %vm295, %v321, %v322
        %v324 = vrot.slane %v204, 1
        %v325 = vsel %vm295, %v322, %v324
        %v326 = vrot.slane %v205, 1
        %v327 = vrot.slane %v206, 1
        %v328 = vsel %vm295, %v326, %v327
        %v329 = vrot.slane %v207, 1
        %v330 = vsel %vm295, %v327, %v329
        %v331 = vrot.slane %v208, 1
        %v332 = vrot.slane %v209, 1
        %v333 = vsel %vm295, %v331, %v332
        %v334 = vrot.slane %v210, 1
        %v335 = vsel %vm295, %v332, %v334
        %v336 = vrot.slane %v211, 1
        %v337 = vrot.slane %v212, 1
        %v338 = vsel %vm295, %v336, %v337
        %v339 = vrot.slane %v213, 1
        %v340 = vsel %vm295, %v337, %v339
        %v341 = vrot.slane %v214, 1
        %v342 = vrot.slane %v215, 1
        %v343 = vsel %vm295, %v341, %v342
        %v344 = vrot.slane %v216, 1
        %v345 = vsel %vm295, %v342, %v344
        %v346 = vrot.slane %v217, 1
        %v347 = vrot.slane %v218, 1
        %v348 = vsel %vm295, %v346, %v347
        %v349 = vrot.slane %v219, 1
        %v350 = vsel %vm295, %v347, %v349
        %v351 = vrot.slane %v220, 1
        %v352 = vrot.slane %v221, 1
        %v353 = vsel %vm295, %v351, %v352
        %v354 = vrot.slane %v222, 1
        %v355 = vsel %vm295, %v352, %v354
        %v356 = vrot.slane %v223, 1
        %v357 = vrot.slane %v224, 1
        %v358 = vsel %vm295, %v356, %v357
        %v359 = vrot.slane %v225, 1
        %v360 = vsel %vm295, %v357, %v359
        %v361 = vrot.slane %v226, 1
        %v362 = vrot.slane %v227, 1
        %v363 = vsel %vm295, %v361, %v362
        %v364 = vrot.slane %v228, 1
        %v365 = vsel %vm295, %v362, %v364
        %v366 = vrot.slane %v229, 1
        %v367 = vrot.slane %v230, 1
        %v368 = vsel %vm295, %v366, %v367
        %v369 = vrot.slane %v231, 1
        %v370 = vsel %vm295, %v367, %v369
        %v371 = vrot.slane %v232, 1
        %v372 = vrot.slane %v233, 1
        %v373 = vsel %vm295, %v371, %v372
        %v374 = vrot.slane %v234, 1
        %v375 = vsel %vm295, %v372, %v374
        %v376 = vrot.slane %v235, 1
        %v377 = vrot.slane %v236, 1
        %v378 = vsel %vm295, %v376, %v377
        %v379 = vrot.slane %v237, 1
        %v380 = vsel %vm295, %v377, %v379
        %v381 = vrot.slane %v238, 1
        %v382 = vrot.slane %v239, 1
        %v383 = vsel %vm295, %v381, %v382
        %v384 = vrot.slane %v240, 1
        %v385 = vsel %vm295, %v382, %v384
        %386 = vrot.lane.b32.xlu0 %v298, 4
        %v387 = vpop.permute.xlu0 %386
        %388 = vrot.lane.b32.xlu0 %v300, 4
        %v389 = vpop.permute.xlu0 %388
        %390 = vrot.lane.b32.xlu0 %v303, 4
        %v391 = vpop.permute.xlu0 %390
        %392 = vrot.lane.b32.xlu0 %v305, 4
        %v393 = vpop.permute.xlu0 %392
        %394 = vrot.lane.b32.xlu0 %v308, 4
        %v395 = vpop.permute.xlu0 %394
        %396 = vrot.lane.b32.xlu0 %v310, 4
        %v397 = vpop.permute.xlu0 %396
        %398 = vrot.lane.b32.xlu0 %v313, 4
        %v399 = vpop.permute.xlu0 %398
        %400 = vrot.lane.b32.xlu0 %v315, 4
        %v401 = vpop.permute.xlu0 %400
        %402 = vrot.lane.b32.xlu0 %v318, 4
        %v403 = vpop.permute.xlu0 %402
        %404 = vrot.lane.b32.xlu0 %v320, 4
        %v405 = vpop.permute.xlu0 %404
        %406 = vrot.lane.b32.xlu0 %v323, 4
        %v407 = vpop.permute.xlu0 %406
        %408 = vrot.lane.b32.xlu0 %v325, 4
        %v409 = vpop.permute.xlu0 %408
        %410 = vrot.lane.b32.xlu0 %v328, 4
        %v411 = vpop.permute.xlu0 %410
        %412 = vrot.lane.b32.xlu0 %v330, 4
        %v413 = vpop.permute.xlu0 %412
        %414 = vrot.lane.b32.xlu0 %v333, 4
        %v415 = vpop.permute.xlu0 %414
        %416 = vrot.lane.b32.xlu0 %v335, 4
        %v417 = vpop.permute.xlu0 %416
        %418 = vrot.lane.b32.xlu0 %v338, 4
        %v419 = vpop.permute.xlu0 %418
        %420 = vrot.lane.b32.xlu0 %v340, 4
        %v421 = vpop.permute.xlu0 %420
        %422 = vrot.lane.b32.xlu0 %v343, 4
        %v423 = vpop.permute.xlu0 %422
        %424 = vrot.lane.b32.xlu0 %v345, 4
        %v425 = vpop.permute.xlu0 %424
        %426 = vrot.lane.b32.xlu0 %v348, 4
        %v427 = vpop.permute.xlu0 %426
        %428 = vrot.lane.b32.xlu0 %v350, 4
        %v429 = vpop.permute.xlu0 %428
        %430 = vrot.lane.b32.xlu0 %v353, 4
        %v431 = vpop.permute.xlu0 %430
        %432 = vrot.lane.b32.xlu0 %v355, 4
        %v433 = vpop.permute.xlu0 %432
        %434 = vrot.lane.b32.xlu0 %v358, 4
        %v435 = vpop.permute.xlu0 %434
        %436 = vrot.lane.b32.xlu0 %v360, 4
        %v437 = vpop.permute.xlu0 %436
        %438 = vrot.lane.b32.xlu0 %v363, 4
        %v439 = vpop.permute.xlu0 %438
        %440 = vrot.lane.b32.xlu0 %v365, 4
        %v441 = vpop.permute.xlu0 %440
        %442 = vrot.lane.b32.xlu0 %v368, 4
        %v443 = vpop.permute.xlu0 %442
        %444 = vrot.lane.b32.xlu0 %v370, 4
        %v445 = vpop.permute.xlu0 %444
        %446 = vrot.lane.b32.xlu0 %v373, 4
        %v447 = vpop.permute.xlu0 %446
        %448 = vrot.lane.b32.xlu0 %v375, 4
        %v449 = vpop.permute.xlu0 %448
        %450 = vrot.lane.b32.xlu0 %v378, 4
        %v451 = vpop.permute.xlu0 %450
        %452 = vrot.lane.b32.xlu0 %v380, 4
        %v453 = vpop.permute.xlu0 %452
        %454 = vrot.lane.b32.xlu0 %v383, 4
        %v455 = vpop.permute.xlu0 %454
        %456 = vrot.lane.b32.xlu0 %v385, 4
        %v457 = vpop.permute.xlu0 %456
        %vm494 = vcmask 31744
        %v495 = vsel %vm494, %v187, %v387
        %v496 = vsel %vm494, %v188, %v389
        %v497 = vsel %vm494, %v190, %v391
        %v498 = vsel %vm494, %v191, %v393
        %v499 = vsel %vm494, %v193, %v395
        %v500 = vsel %vm494, %v194, %v397
        %v501 = vsel %vm494, %v196, %v399
        %v502 = vsel %vm494, %v197, %v401
        %v503 = vsel %vm494, %v199, %v403
        %v504 = vsel %vm494, %v200, %v405
        %v505 = vsel %vm494, %v202, %v407
        %v506 = vsel %vm494, %v203, %v409
        %v507 = vsel %vm494, %v205, %v411
        %v508 = vsel %vm494, %v206, %v413
        %v509 = vsel %vm494, %v208, %v415
        %v510 = vsel %vm494, %v209, %v417
        %v511 = vsel %vm494, %v211, %v419
        %v512 = vsel %vm494, %v212, %v421
        %v513 = vsel %vm494, %v214, %v423
        %v514 = vsel %vm494, %v215, %v425
        %v515 = vsel %vm494, %v217, %v427
        %v516 = vsel %vm494, %v218, %v429
        %v517 = vsel %vm494, %v220, %v431
        %v518 = vsel %vm494, %v221, %v433
        %v519 = vsel %vm494, %v223, %v435
        %v520 = vsel %vm494, %v224, %v437
        %v521 = vsel %vm494, %v226, %v439
        %v522 = vsel %vm494, %v227, %v441
        %v523 = vsel %vm494, %v229, %v443
        %v524 = vsel %vm494, %v230, %v445
        %v525 = vsel %vm494, %v232, %v447
        %v526 = vsel %vm494, %v233, %v449
        %v527 = vsel %vm494, %v235, %v451
        %v528 = vsel %vm494, %v236, %v453
        %v529 = vsel %vm494, %v238, %v455
        %v530 = vsel %vm494, %v239, %v457
        %531 = vrot.lane.b32.xlu0 %v299, 4
        %v532 = vpop.permute.xlu0 %531
        %533 = vrot.lane.b32.xlu0 %v304, 4
        %v534 = vpop.permute.xlu0 %533
        %535 = vrot.lane.b32.xlu0 %v309, 4
        %v536 = vpop.permute.xlu0 %535
        %537 = vrot.lane.b32.xlu0 %v314, 4
        %v538 = vpop.permute.xlu0 %537
        %539 = vrot.lane.b32.xlu0 %v319, 4
        %v540 = vpop.permute.xlu0 %539
        %541 = vrot.lane.b32.xlu0 %v324, 4
        %v542 = vpop.permute.xlu0 %541
        %543 = vrot.lane.b32.xlu0 %v329, 4
        %v544 = vpop.permute.xlu0 %543
        %545 = vrot.lane.b32.xlu0 %v334, 4
        %v546 = vpop.permute.xlu0 %545
        %547 = vrot.lane.b32.xlu0 %v339, 4
        %v548 = vpop.permute.xlu0 %547
        %549 = vrot.lane.b32.xlu0 %v344, 4
        %v550 = vpop.permute.xlu0 %549
        %551 = vrot.lane.b32.xlu0 %v349, 4
        %v552 = vpop.permute.xlu0 %551
        %553 = vrot.lane.b32.xlu0 %v354, 4
        %v554 = vpop.permute.xlu0 %553
        %555 = vrot.lane.b32.xlu0 %v359, 4
        %v556 = vpop.permute.xlu0 %555
        %557 = vrot.lane.b32.xlu0 %v364, 4
        %v558 = vpop.permute.xlu0 %557
        %559 = vrot.lane.b32.xlu0 %v369, 4
        %v560 = vpop.permute.xlu0 %559
        %561 = vrot.lane.b32.xlu0 %v374, 4
        %v562 = vpop.permute.xlu0 %561
        %563 = vrot.lane.b32.xlu0 %v379, 4
        %v564 = vpop.permute.xlu0 %563
        %565 = vrot.lane.b32.xlu0 %v384, 4
        %v566 = vpop.permute.xlu0 %565
        %v585 = vsel %vm494, %v189, %v532
        %v586 = vsel %vm494, %v192, %v534
        %v587 = vsel %vm494, %v195, %v536
        %v588 = vsel %vm494, %v198, %v538
        %v589 = vsel %vm494, %v201, %v540
        %v590 = vsel %vm494, %v204, %v542
        %v591 = vsel %vm494, %v207, %v544
        %v592 = vsel %vm494, %v210, %v546
        %v593 = vsel %vm494, %v213, %v548
        %v594 = vsel %vm494, %v216, %v550
        %v595 = vsel %vm494, %v219, %v552
        %v596 = vsel %vm494, %v222, %v554
        %v597 = vsel %vm494, %v225, %v556
        %v598 = vsel %vm494, %v228, %v558
        %v599 = vsel %vm494, %v231, %v560
        %v600 = vsel %vm494, %v234, %v562
        %v601 = vsel %vm494, %v237, %v564
        %v602 = vsel %vm494, %v240, %v566
        %v603 = vld [vmem:[%s2] sm:$0x1]
        %636 = vrot.lane.b32.xlu0 %v497, 8
        %v637 = vpop.permute.xlu0 %636
        %638 = vrot.lane.b32.xlu0 %v498, 8
        %v639 = vpop.permute.xlu0 %638
        %640 = vrot.lane.b32.xlu0 %v499, 8
        %v641 = vpop.permute.xlu0 %640
        %642 = vrot.lane.b32.xlu0 %v500, 8
        %v643 = vpop.permute.xlu0 %642
        %644 = vrot.lane.b32.xlu0 %v501, 8
        %v645 = vpop.permute.xlu0 %644
        %646 = vrot.lane.b32.xlu0 %v502, 8
        %v647 = vpop.permute.xlu0 %646
        %648 = vrot.lane.b32.xlu0 %v503, 8
        %v649 = vpop.permute.xlu0 %648
        %650 = vrot.lane.b32.xlu0 %v504, 8
        %v651 = vpop.permute.xlu0 %650
        %652 = vrot.lane.b32.xlu0 %v505, 8
        %v653 = vpop.permute.xlu0 %652
        %654 = vrot.lane.b32.xlu0 %v506, 8
        %v655 = vpop.permute.xlu0 %654
        %656 = vrot.lane.b32.xlu0 %v507, 8
        %v657 = vpop.permute.xlu0 %656
        %658 = vrot.lane.b32.xlu0 %v508, 8
        %v659 = vpop.permute.xlu0 %658
        %660 = vrot.lane.b32.xlu0 %v509, 8
        %v661 = vpop.permute.xlu0 %660
        %662 = vrot.lane.b32.xlu0 %v510, 8
        %v663 = vpop.permute.xlu0 %662
        %664 = vrot.lane.b32.xlu0 %v511, 8
        %v665 = vpop.permute.xlu0 %664
        %666 = vrot.lane.b32.xlu0 %v512, 8
        %v667 = vpop.permute.xlu0 %666
        %668 = vrot.lane.b32.xlu0 %v513, 8
        %v669 = vpop.permute.xlu0 %668
        %670 = vrot.lane.b32.xlu0 %v514, 8
        %v671 = vpop.permute.xlu0 %670
        %672 = vrot.lane.b32.xlu0 %v515, 8
        %v673 = vpop.permute.xlu0 %672
        %674 = vrot.lane.b32.xlu0 %v516, 8
        %v675 = vpop.permute.xlu0 %674
        %676 = vrot.lane.b32.xlu0 %v517, 8
        %v677 = vpop.permute.xlu0 %676
        %678 = vrot.lane.b32.xlu0 %v518, 8
        %v679 = vpop.permute.xlu0 %678
        %680 = vrot.lane.b32.xlu0 %v519, 8
        %v681 = vpop.permute.xlu0 %680
        %682 = vrot.lane.b32.xlu0 %v520, 8
        %v683 = vpop.permute.xlu0 %682
        %684 = vrot.lane.b32.xlu0 %v521, 8
        %v685 = vpop.permute.xlu0 %684
        %686 = vrot.lane.b32.xlu0 %v522, 8
        %v687 = vpop.permute.xlu0 %686
        %688 = vrot.lane.b32.xlu0 %v523, 8
        %v689 = vpop.permute.xlu0 %688
        %690 = vrot.lane.b32.xlu0 %v524, 8
        %v691 = vpop.permute.xlu0 %690
        %692 = vrot.lane.b32.xlu0 %v525, 8
        %v693 = vpop.permute.xlu0 %692
        %694 = vrot.lane.b32.xlu0 %v526, 8
        %v695 = vpop.permute.xlu0 %694
        %696 = vrot.lane.b32.xlu0 %v527, 8
        %v697 = vpop.permute.xlu0 %696
        %698 = vrot.lane.b32.xlu0 %v528, 8
        %v699 = vpop.permute.xlu0 %698
        %vm732 = vcmask 64512
        %v733 = vsel %vm732, %v495, %v637
        %v734 = vsel %vm732, %v496, %v639
        %v735 = vsel %vm732, %v497, %v641
        %v736 = vsel %vm732, %v498, %v643
        %v737 = vsel %vm732, %v499, %v645
        %v738 = vsel %vm732, %v500, %v647
        %v739 = vsel %vm732, %v501, %v649
        %v740 = vsel %vm732, %v502, %v651
        %v741 = vsel %vm732, %v503, %v653
        %v742 = vsel %vm732, %v504, %v655
        %v743 = vsel %vm732, %v505, %v657
        %v744 = vsel %vm732, %v506, %v659
        %v745 = vsel %vm732, %v507, %v661
        %v746 = vsel %vm732, %v508, %v663
        %v747 = vsel %vm732, %v509, %v665
        %v748 = vsel %vm732, %v510, %v667
        %v749 = vsel %vm732, %v511, %v669
        %v750 = vsel %vm732, %v512, %v671
        %v751 = vsel %vm732, %v513, %v673
        %v752 = vsel %vm732, %v514, %v675
        %v753 = vsel %vm732, %v515, %v677
        %v754 = vsel %vm732, %v516, %v679
        %v755 = vsel %vm732, %v517, %v681
        %v756 = vsel %vm732, %v518, %v683
        %v757 = vsel %vm732, %v519, %v685
        %v758 = vsel %vm732, %v520, %v687
        %v759 = vsel %vm732, %v521, %v689
        %v760 = vsel %vm732, %v522, %v691
        %v761 = vsel %vm732, %v523, %v693
        %v762 = vsel %vm732, %v524, %v695
        %v763 = vsel %vm732, %v525, %v697
        %v764 = vsel %vm732, %v526, %v699
        %v765 = vld [vmem:[%s1] sm:$0xff]
        %v766 = vld [vmem:[%s1 + $0x8] sm:$0xff]
        %v768 = vlaneseq
        %v769 = vshrl.u32 %v768, 7
        %v770 = vsub.s32 0, %v769
        %v771 = vrot.slane %v603, %v770
        %vm773 = vcmask 130048
        %v775 = vsel %vm773, %v733, 0
        %v778 = vsel %vm773, %v734, 0
        %v781 = vsel %vm773, %v735, 0
        %v784 = vsel %vm773, %v736, 0
        %v787 = vsel %vm773, %v737, 0
        %v790 = vsel %vm773, %v738, 0
        %v793 = vsel %vm773, %v739, 0
        %v796 = vsel %vm773, %v740, 0
        %v799 = vsel %vm773, %v741, 0
        %v802 = vsel %vm773, %v742, 0
        %v805 = vsel %vm773, %v743, 0
        %v808 = vsel %vm773, %v744, 0
        %v811 = vsel %vm773, %v745, 0
        %v814 = vsel %vm773, %v746, 0
        %v817 = vsel %vm773, %v747, 0
        %v820 = vsel %vm773, %v748, 0
        %v823 = vsel %vm773, %v749, 0
        %v826 = vsel %vm773, %v750, 0
        %v829 = vsel %vm773, %v751, 0
        %v832 = vsel %vm773, %v752, 0
        %v835 = vsel %vm773, %v753, 0
        %v838 = vsel %vm773, %v754, 0
        %v841 = vsel %vm773, %v755, 0
        %v844 = vsel %vm773, %v756, 0
        %v847 = vsel %vm773, %v757, 0
        %v850 = vsel %vm773, %v758, 0
        %v853 = vsel %vm773, %v759, 0
        %v856 = vsel %vm773, %v760, 0
        %v859 = vsel %vm773, %v761, 0
        %v862 = vsel %vm773, %v762, 0
        %v865 = vsel %vm773, %v763, 0
        %v868 = vsel %vm773, %v764, 0
        %870 = vmatprep.subr.mxu0 0.0
        %871 = vmatpush1.msra.mxu0 %v765
        %872 = vmatprep.subr.mxu0 0.0
        %873 = vmatpush1.msra.mxu0 %v766
        %874 = vmatprep.subr.mxu0 0.0
        %875 = vmatpush1.msra.mxu0 0.0
        %876 = vmatprep.subr.mxu0 0.0
        %877 = vmatpush1.msra.mxu0 0.0
        %878 = vmatprep.subr.mxu0 0.0
        %879 = vmatpush1.msra.mxu0 0.0
        %880 = vmatprep.subr.mxu0 0.0
        %881 = vmatpush1.msra.mxu0 0.0
        %882 = vmatprep.subr.mxu0 0.0
        %883 = vmatpush1.msra.mxu0 0.0
        %884 = vmatprep.subr.mxu0 0.0
        %885 = vmatpush1.msra.mxu0 0.0
        %886 = vmatprep.subr.mxu0 0.0
        %887 = vmatpush1.msra.mxu0 0.0
        %888 = vmatprep.subr.mxu0 0.0
        %889 = vmatpush1.msra.mxu0 0.0
        %890 = vmatprep.subr.mxu0 0.0
        %891 = vmatpush1.msra.mxu0 0.0
        %892 = vmatprep.subr.mxu0 0.0
        %893 = vmatpush1.msra.mxu0 0.0
        %894 = vmatprep.subr.mxu0 0.0
        %895 = vmatpush1.msra.mxu0 0.0
        %896 = vmatprep.subr.mxu0 0.0
        %897 = vmatpush1.msra.mxu0 0.0
        %898 = vmatprep.subr.mxu0 0.0
        %899 = vmatpush1.msra.mxu0 0.0
        %900 = vmatprep.subr.mxu0 0.0
        %901 = vmatpush1.msra.mxu0 0.0
        %902 = vmatprep.subr.mxu0 0.0
        %903 = vmatpush1.msra.mxu0 0.0
        %904 = vmatprep.subr.mxu0 0.0
        %905 = vmatpush1.msra.mxu0 0.0
        %906 = vmatprep.subr.mxu0 0.0
        %907 = vmatpush1.msra.mxu0 0.0
        %908 = vmatprep.subr.mxu0 0.0
        %909 = vmatpush1.msra.mxu0 0.0
        %910 = vmatprep.subr.mxu0 0.0
        %911 = vmatpush1.msra.mxu0 0.0
        %912 = vmatprep.subr.mxu0 0.0
        %913 = vmatpush1.msra.mxu0 0.0
        %914 = vmatprep.subr.mxu0 0.0
        %915 = vmatpush1.msra.mxu0 0.0
        %916 = vmatprep.subr.mxu0 0.0
        %917 = vmatpush1.msra.mxu0 0.0
        %918 = vmatprep.subr.mxu0 0.0
        %919 = vmatpush1.msra.mxu0 0.0
        %920 = vmatprep.subr.mxu0 0.0
        %921 = vmatpush1.msra.mxu0 0.0
        %922 = vmatprep.subr.mxu0 0.0
        %923 = vmatpush1.msra.mxu0 0.0
        %924 = vmatprep.subr.mxu0 0.0
        %925 = vmatpush1.msra.mxu0 0.0
        %926 = vmatprep.subr.mxu0 0.0
        %927 = vmatpush1.msra.mxu0 0.0
        %928 = vmatprep.subr.mxu0 0.0
        %929 = vmatpush1.msra.mxu0 0.0
        %930 = vmatprep.subr.mxu0 0.0
        %931 = vmatpush1.msra.mxu0 0.0
        %932 = vmatprep.subr.mxu0 0.0
        %933 = vmatpush1.msra.mxu0 0.0
        %934 = vmatprep.mubr.f32.mxu0 0.0
        %935 = vmatmul.mubr.f32.gmra.mrb[0].mxu0 %v775
        %v936 = vpop.f32.mrb[0].mxu0
        %v937 = vadd.f32 %v771, %v936
        %v938 = vpop.f32.mrb[0].mxu0
        %939 = vmatprep.mubr.f32.mxu0 0.0
        %940 = vmatmul.mubr.f32.gmra.mrb[0].mxu0 %v778
        %v941 = vpop.f32.mrb[0].mxu0
        %v942 = vadd.f32 %v771, %v941
        %v943 = vpop.f32.mrb[0].mxu0
        %944 = vmatprep.mubr.f32.mxu0 0.0
        %945 = vmatmul.mubr.f32.gmra.mrb[0].mxu0 %v781
        %v946 = vpop.f32.mrb[0].mxu0
        %v947 = vadd.f32 %v771, %v946
        %v948 = vpop.f32.mrb[0].mxu0
        %949 = vmatprep.mubr.f32.mxu0 0.0
        %950 = vmatmul.mubr.f32.gmra.mrb[0].mxu0 %v784
        %v951 = vpop.f32.mrb[0].mxu0
        %v952 = vadd.f32 %v771, %v951
        %v953 = vpop.f32.mrb[0].mxu0
        %954 = vmatprep.mubr.f32.mxu0 0.0
        %955 = vmatmul.mubr.f32.gmra.mrb[0].mxu0 %v787
        %v956 = vpop.f32.mrb[0].mxu0
        %v957 = vadd.f32 %v771, %v956
        %v958 = vpop.f32.mrb[0].mxu0
        %959 = vmatprep.mubr.f32.mxu0 0.0
        %960 = vmatmul.mubr.f32.gmra.mrb[0].mxu0 %v790
        %v961 = vpop.f32.mrb[0].mxu0
        %v962 = vadd.f32 %v771, %v961
        %v963 = vpop.f32.mrb[0].mxu0
        %964 = vmatprep.mubr.f32.mxu0 0.0
        %965 = vmatmul.mubr.f32.gmra.mrb[0].mxu0 %v793
        %v966 = vpop.f32.mrb[0].mxu0
        %v967 = vadd.f32 %v771, %v966
        %v968 = vpop.f32.mrb[0].mxu0
        %969 = vmatprep.mubr.f32.mxu0 0.0
        %970 = vmatmul.mubr.f32.gmra.mrb[0].mxu0 %v796
        %v971 = vpop.f32.mrb[0].mxu0
        %v972 = vadd.f32 %v771, %v971
        %v973 = vpop.f32.mrb[0].mxu0
        %974 = vmatprep.mubr.f32.mxu0 0.0
        %975 = vmatmul.mubr.f32.gmra.mrb[0].mxu0 %v799
        %v976 = vpop.f32.mrb[0].mxu0
        %v977 = vadd.f32 %v771, %v976
        %v978 = vpop.f32.mrb[0].mxu0
        %979 = vmatprep.mubr.f32.mxu0 0.0
        %980 = vmatmul.mubr.f32.gmra.mrb[0].mxu0 %v802
        %v981 = vpop.f32.mrb[0].mxu0
        %v982 = vadd.f32 %v771, %v981
        %v983 = vpop.f32.mrb[0].mxu0
        %984 = vmatprep.mubr.f32.mxu0 0.0
        %985 = vmatmul.mubr.f32.gmra.mrb[0].mxu0 %v805
        %v986 = vpop.f32.mrb[0].mxu0
        %v987 = vadd.f32 %v771, %v986
        %v988 = vpop.f32.mrb[0].mxu0
        %989 = vmatprep.mubr.f32.mxu0 0.0
        %990 = vmatmul.mubr.f32.gmra.mrb[0].mxu0 %v808
        %v991 = vpop.f32.mrb[0].mxu0
        %v992 = vadd.f32 %v771, %v991
        %v993 = vpop.f32.mrb[0].mxu0
        %994 = vmatprep.mubr.f32.mxu0 0.0
        %995 = vmatmul.mubr.f32.gmra.mrb[0].mxu0 %v811
        %v996 = vpop.f32.mrb[0].mxu0
        %v997 = vadd.f32 %v771, %v996
        %v998 = vpop.f32.mrb[0].mxu0
        %999 = vmatprep.mubr.f32.mxu0 0.0
        %1000 = vmatmul.mubr.f32.gmra.mrb[0].mxu0 %v814
        %v1001 = vpop.f32.mrb[0].mxu0
        %v1002 = vadd.f32 %v771, %v1001
        %v1003 = vpop.f32.mrb[0].mxu0
        %1004 = vmatprep.mubr.f32.mxu0 0.0
        %1005 = vmatmul.mubr.f32.gmra.mrb[0].mxu0 %v817
        %v1006 = vpop.f32.mrb[0].mxu0
        %v1007 = vadd.f32 %v771, %v1006
        %v1008 = vpop.f32.mrb[0].mxu0
        %1009 = vmatprep.mubr.f32.mxu0 0.0
        %1010 = vmatmul.mubr.f32.gmra.mrb[0].mxu0 %v820
        %v1011 = vpop.f32.mrb[0].mxu0
        %v1012 = vadd.f32 %v771, %v1011
        %v1013 = vpop.f32.mrb[0].mxu0
        %1014 = vmatprep.mubr.f32.mxu0 0.0
        %1015 = vmatmul.mubr.f32.gmra.mrb[0].mxu0 %v823
        %v1016 = vpop.f32.mrb[0].mxu0
        %v1017 = vadd.f32 %v771, %v1016
        %v1018 = vpop.f32.mrb[0].mxu0
        %1019 = vmatprep.mubr.f32.mxu0 0.0
        %1020 = vmatmul.mubr.f32.gmra.mrb[0].mxu0 %v826
        %v1021 = vpop.f32.mrb[0].mxu0
        %v1022 = vadd.f32 %v771, %v1021
        %v1023 = vpop.f32.mrb[0].mxu0
        %1024 = vmatprep.mubr.f32.mxu0 0.0
        %1025 = vmatmul.mubr.f32.gmra.mrb[0].mxu0 %v829
        %v1026 = vpop.f32.mrb[0].mxu0
        %v1027 = vadd.f32 %v771, %v1026
        %v1028 = vpop.f32.mrb[0].mxu0
        %1029 = vmatprep.mubr.f32.mxu0 0.0
        %1030 = vmatmul.mubr.f32.gmra.mrb[0].mxu0 %v832
        %v1031 = vpop.f32.mrb[0].mxu0
        %v1032 = vadd.f32 %v771, %v1031
        %v1033 = vpop.f32.mrb[0].mxu0
        %1034 = vmatprep.mubr.f32.mxu0 0.0
        %1035 = vmatmul.mubr.f32.gmra.mrb[0].mxu0 %v835
        %v1036 = vpop.f32.mrb[0].mxu0
        %v1037 = vadd.f32 %v771, %v1036
        %v1038 = vpop.f32.mrb[0].mxu0
        %1039 = vmatprep.mubr.f32.mxu0 0.0
        %1040 = vmatmul.mubr.f32.gmra.mrb[0].mxu0 %v838
        %v1041 = vpop.f32.mrb[0].mxu0
        %v1042 = vadd.f32 %v771, %v1041
        %v1043 = vpop.f32.mrb[0].mxu0
        %1044 = vmatprep.mubr.f32.mxu0 0.0
        %1045 = vmatmul.mubr.f32.gmra.mrb[0].mxu0 %v841
        %v1046 = vpop.f32.mrb[0].mxu0
        %v1047 = vadd.f32 %v771, %v1046
        %v1048 = vpop.f32.mrb[0].mxu0
        %1049 = vmatprep.mubr.f32.mxu0 0.0
        %1050 = vmatmul.mubr.f32.gmra.mrb[0].mxu0 %v844
        %v1051 = vpop.f32.mrb[0].mxu0
        %v1052 = vadd.f32 %v771, %v1051
        %v1053 = vpop.f32.mrb[0].mxu0
        %1054 = vmatprep.mubr.f32.mxu0 0.0
        %1055 = vmatmul.mubr.f32.gmra.mrb[0].mxu0 %v847
        %v1056 = vpop.f32.mrb[0].mxu0
        %v1057 = vadd.f32 %v771, %v1056
        %v1058 = vpop.f32.mrb[0].mxu0
        %1059 = vmatprep.mubr.f32.mxu0 0.0
        %1060 = vmatmul.mubr.f32.gmra.mrb[0].mxu0 %v850
        %v1061 = vpop.f32.mrb[0].mxu0
        %v1062 = vadd.f32 %v771, %v1061
        %v1063 = vpop.f32.mrb[0].mxu0
        %1064 = vmatprep.mubr.f32.mxu0 0.0
        %1065 = vmatmul.mubr.f32.gmra.mrb[0].mxu0 %v853
        %v1066 = vpop.f32.mrb[0].mxu0
        %v1067 = vadd.f32 %v771, %v1066
        %v1068 = vpop.f32.mrb[0].mxu0
        %1069 = vmatprep.mubr.f32.mxu0 0.0
        %1070 = vmatmul.mubr.f32.gmra.mrb[0].mxu0 %v856
        %v1071 = vpop.f32.mrb[0].mxu0
        %v1072 = vadd.f32 %v771, %v1071
        %v1073 = vpop.f32.mrb[0].mxu0
        %1074 = vmatprep.mubr.f32.mxu0 0.0
        %1075 = vmatmul.mubr.f32.gmra.mrb[0].mxu0 %v859
        %v1076 = vpop.f32.mrb[0].mxu0
        %v1077 = vadd.f32 %v771, %v1076
        %v1078 = vpop.f32.mrb[0].mxu0
        %1079 = vmatprep.mubr.f32.mxu0 0.0
        %1080 = vmatmul.mubr.f32.gmra.mrb[0].mxu0 %v862
        %v1081 = vpop.f32.mrb[0].mxu0
        %v1082 = vadd.f32 %v771, %v1081
        %v1083 = vpop.f32.mrb[0].mxu0
        %1084 = vmatprep.mubr.f32.mxu0 0.0
        %1085 = vmatmul.mubr.f32.gmra.mrb[0].mxu0 %v865
        %v1086 = vpop.f32.mrb[0].mxu0
        %v1087 = vadd.f32 %v771, %v1086
        %v1088 = vpop.f32.mrb[0].mxu0
        %1089 = vmatprep.mubr.f32.mxu0 0.0
        %1090 = vmatmul.mubr.f32.gmra.mrb[0].mxu0 %v868
        %v1091 = vpop.f32.mrb[0].mxu0
        %v1092 = vadd.f32 %v771, %v1091
        %v1093 = vpop.f32.mrb[0].mxu0
        %1094 = vdwg.mxu0
        %1111 = vrot.lane.b32.xlu0 %v586, 8
        %v1112 = vpop.permute.xlu0 %1111
        %1113 = vrot.lane.b32.xlu0 %v587, 8
        %v1114 = vpop.permute.xlu0 %1113
        %1115 = vrot.lane.b32.xlu0 %v588, 8
        %v1116 = vpop.permute.xlu0 %1115
        %1117 = vrot.lane.b32.xlu0 %v589, 8
        %v1118 = vpop.permute.xlu0 %1117
        %1119 = vrot.lane.b32.xlu0 %v590, 8
        %v1120 = vpop.permute.xlu0 %1119
        %1121 = vrot.lane.b32.xlu0 %v591, 8
        %v1122 = vpop.permute.xlu0 %1121
        %1123 = vrot.lane.b32.xlu0 %v592, 8
        %v1124 = vpop.permute.xlu0 %1123
        %1125 = vrot.lane.b32.xlu0 %v593, 8
        %v1126 = vpop.permute.xlu0 %1125
        %1127 = vrot.lane.b32.xlu0 %v594, 8
        %v1128 = vpop.permute.xlu0 %1127
        %1129 = vrot.lane.b32.xlu0 %v595, 8
        %v1130 = vpop.permute.xlu0 %1129
        %1131 = vrot.lane.b32.xlu0 %v596, 8
        %v1132 = vpop.permute.xlu0 %1131
        %1133 = vrot.lane.b32.xlu0 %v597, 8
        %v1134 = vpop.permute.xlu0 %1133
        %1135 = vrot.lane.b32.xlu0 %v598, 8
        %v1136 = vpop.permute.xlu0 %1135
        %1137 = vrot.lane.b32.xlu0 %v599, 8
        %v1138 = vpop.permute.xlu0 %1137
        %1139 = vrot.lane.b32.xlu0 %v600, 8
        %v1140 = vpop.permute.xlu0 %1139
        %1141 = vrot.lane.b32.xlu0 %v601, 8
        %v1142 = vpop.permute.xlu0 %1141
        %v1159 = vsel %vm732, %v585, %v1112
        %v1160 = vsel %vm732, %v586, %v1114
        %v1161 = vsel %vm732, %v587, %v1116
        %v1162 = vsel %vm732, %v588, %v1118
        %v1163 = vsel %vm732, %v589, %v1120
        %v1164 = vsel %vm732, %v590, %v1122
        %v1165 = vsel %vm732, %v591, %v1124
        %v1166 = vsel %vm732, %v592, %v1126
        %v1167 = vsel %vm732, %v593, %v1128
        %v1168 = vsel %vm732, %v594, %v1130
        %v1169 = vsel %vm732, %v595, %v1132
        %v1170 = vsel %vm732, %v596, %v1134
        %v1171 = vsel %vm732, %v597, %v1136
        %v1172 = vsel %vm732, %v598, %v1138
        %v1173 = vsel %vm732, %v599, %v1140
        %v1174 = vsel %vm732, %v600, %v1142
        %v1191 = vrot.slane %v733, 1
        %v1192 = vrot.slane %v734, 1
        %v1193 = vsel %vm295, %v1191, %v1192
        %v1194 = vrot.slane %v1159, 1
        %v1195 = vsel %vm295, %v1192, %v1194
        %v1196 = vrot.slane %v735, 1
        %v1197 = vrot.slane %v736, 1
        %v1198 = vsel %vm295, %v1196, %v1197
        %v1199 = vrot.slane %v1160, 1
        %v1200 = vsel %vm295, %v1197, %v1199
        %v1201 = vrot.slane %v737, 1
        %v1202 = vrot.slane %v738, 1
        %v1203 = vsel %vm295, %v1201, %v1202
        %v1204 = vrot.slane %v1161, 1
        %v1205 = vsel %vm295, %v1202, %v1204
        %v1206 = vrot.slane %v739, 1
        %v1207 = vrot.slane %v740, 1
        %v1208 = vsel %vm295, %v1206, %v1207
        %v1209 = vrot.slane %v1162, 1
        %v1210 = vsel %vm295, %v1207, %v1209
        %v1211 = vrot.slane %v741, 1
        %v1212 = vrot.slane %v742, 1
        %v1213 = vsel %vm295, %v1211, %v1212
        %v1214 = vrot.slane %v1163, 1
        %v1215 = vsel %vm295, %v1212, %v1214
        %v1216 = vrot.slane %v743, 1
        %v1217 = vrot.slane %v744, 1
        %v1218 = vsel %vm295, %v1216, %v1217
        %v1219 = vrot.slane %v1164, 1
        %v1220 = vsel %vm295, %v1217, %v1219
        %v1221 = vrot.slane %v745, 1
        %v1222 = vrot.slane %v746, 1
        %v1223 = vsel %vm295, %v1221, %v1222
        %v1224 = vrot.slane %v1165, 1
        %v1225 = vsel %vm295, %v1222, %v1224
        %v1226 = vrot.slane %v747, 1
        %v1227 = vrot.slane %v748, 1
        %v1228 = vsel %vm295, %v1226, %v1227
        %v1229 = vrot.slane %v1166, 1
        %v1230 = vsel %vm295, %v1227, %v1229
        %v1231 = vrot.slane %v749, 1
        %v1232 = vrot.slane %v750, 1
        %v1233 = vsel %vm295, %v1231, %v1232
        %v1234 = vrot.slane %v1167, 1
        %v1235 = vsel %vm295, %v1232, %v1234
        %v1236 = vrot.slane %v751, 1
        %v1237 = vrot.slane %v752, 1
        %v1238 = vsel %vm295, %v1236, %v1237
        %v1239 = vrot.slane %v1168, 1
        %v1240 = vsel %vm295, %v1237, %v1239
        %v1241 = vrot.slane %v753, 1
        %v1242 = vrot.slane %v754, 1
        %v1243 = vsel %vm295, %v1241, %v1242
        %v1244 = vrot.slane %v1169, 1
        %v1245 = vsel %vm295, %v1242, %v1244
        %v1246 = vrot.slane %v755, 1
        %v1247 = vrot.slane %v756, 1
        %v1248 = vsel %vm295, %v1246, %v1247
        %v1249 = vrot.slane %v1170, 1
        %v1250 = vsel %vm295, %v1247, %v1249
        %v1251 = vrot.slane %v757, 1
        %v1252 = vrot.slane %v758, 1
        %v1253 = vsel %vm295, %v1251, %v1252
        %v1254 = vrot.slane %v1171, 1
        %v1255 = vsel %vm295, %v1252, %v1254
        %v1256 = vrot.slane %v759, 1
        %v1257 = vrot.slane %v760, 1
        %v1258 = vsel %vm295, %v1256, %v1257
        %v1259 = vrot.slane %v1172, 1
        %v1260 = vsel %vm295, %v1257, %v1259
        %v1261 = vrot.slane %v761, 1
        %v1262 = vrot.slane %v762, 1
        %v1263 = vsel %vm295, %v1261, %v1262
        %v1264 = vrot.slane %v1173, 1
        %v1265 = vsel %vm295, %v1262, %v1264
        %v1266 = vrot.slane %v763, 1
        %v1267 = vrot.slane %v764, 1
        %v1268 = vsel %vm295, %v1266, %v1267
        %v1269 = vrot.slane %v1174, 1
        %v1270 = vsel %vm295, %v1267, %v1269
        %s1271 = scalar_lea.vmem %s1, 32
        %v1272 = vld [vmem:[%s1271] sm:$0xff]
        %v1273 = vld [vmem:[%s1271 + $0x8] sm:$0xff]
        %v1274 = vsel %vm773, %v1193, 0
        %v1276 = vsel %vm773, %v1195, 0
        %v1278 = vsel %vm773, %v1198, 0
        %v1280 = vsel %vm773, %v1200, 0
        %v1282 = vsel %vm773, %v1203, 0
        %v1284 = vsel %vm773, %v1205, 0
        %v1286 = vsel %vm773, %v1208, 0
        %v1288 = vsel %vm773, %v1210, 0
        %v1290 = vsel %vm773, %v1213, 0
        %v1292 = vsel %vm773, %v1215, 0
        %v1294 = vsel %vm773, %v1218, 0
        %v1296 = vsel %vm773, %v1220, 0
        %v1298 = vsel %vm773, %v1223, 0
        %v1300 = vsel %vm773, %v1225, 0
        %v1302 = vsel %vm773, %v1228, 0
        %v1304 = vsel %vm773, %v1230, 0
        %v1306 = vsel %vm773, %v1233, 0
        %v1308 = vsel %vm773, %v1235, 0
        %v1310 = vsel %vm773, %v1238, 0
        %v1312 = vsel %vm773, %v1240, 0
        %v1314 = vsel %vm773, %v1243, 0
        %v1316 = vsel %vm773, %v1245, 0
        %v1318 = vsel %vm773, %v1248, 0
        %v1320 = vsel %vm773, %v1250, 0
        %v1322 = vsel %vm773, %v1253, 0
        %v1324 = vsel %vm773, %v1255, 0
        %v1326 = vsel %vm773, %v1258, 0
        %v1328 = vsel %vm773, %v1260, 0
        %v1330 = vsel %vm773, %v1263, 0
        %v1332 = vsel %vm773, %v1265, 0
        %v1334 = vsel %vm773, %v1268, 0
        %v1336 = vsel %vm773, %v1270, 0
        %1338 = vmatprep.subr.mxu0 0.0
        %1339 = vmatpush1.msra.mxu0 %v1272
        %1340 = vmatprep.subr.mxu0 0.0
        %1341 = vmatpush1.msra.mxu0 %v1273
        %1342 = vmatprep.subr.mxu0 0.0
        %1343 = vmatpush1.msra.mxu0 0.0
        %1344 = vmatprep.subr.mxu0 0.0
        %1345 = vmatpush1.msra.mxu0 0.0
        %1346 = vmatprep.subr.mxu0 0.0
        %1347 = vmatpush1.msra.mxu0 0.0
        %1348 = vmatprep.subr.mxu0 0.0
        %1349 = vmatpush1.msra.mxu0 0.0
        %1350 = vmatprep.subr.mxu0 0.0
        %1351 = vmatpush1.msra.mxu0 0.0
        %1352 = vmatprep.subr.mxu0 0.0
        %1353 = vmatpush1.msra.mxu0 0.0
        %1354 = vmatprep.subr.mxu0 0.0
        %1355 = vmatpush1.msra.mxu0 0.0
        %1356 = vmatprep.subr.mxu0 0.0
        %1357 = vmatpush1.msra.mxu0 0.0
        %1358 = vmatprep.subr.mxu0 0.0
        %1359 = vmatpush1.msra.mxu0 0.0
        %1360 = vmatprep.subr.mxu0 0.0
        %1361 = vmatpush1.msra.mxu0 0.0
        %1362 = vmatprep.subr.mxu0 0.0
        %1363 = vmatpush1.msra.mxu0 0.0
        %1364 = vmatprep.subr.mxu0 0.0
        %1365 = vmatpush1.msra.mxu0 0.0
        %1366 = vmatprep.subr.mxu0 0.0
        %1367 = vmatpush1.msra.mxu0 0.0
        %1368 = vmatprep.subr.mxu0 0.0
        %1369 = vmatpush1.msra.mxu0 0.0
        %1370 = vmatprep.subr.mxu0 0.0
        %1371 = vmatpush1.msra.mxu0 0.0
        %1372 = vmatprep.subr.mxu0 0.0
        %1373 = vmatpush1.msra.mxu0 0.0
        %1374 = vmatprep.subr.mxu0 0.0
        %1375 = vmatpush1.msra.mxu0 0.0
        %1376 = vmatprep.subr.mxu0 0.0
        %1377 = vmatpush1.msra.mxu0 0.0
        %1378 = vmatprep.subr.mxu0 0.0
        %1379 = vmatpush1.msra.mxu0 0.0
        %1380 = vmatprep.subr.mxu0 0.0
        %1381 = vmatpush1.msra.mxu0 0.0
        %1382 = vmatprep.subr.mxu0 0.0
        %1383 = vmatpush1.msra.mxu0 0.0
        %1384 = vmatprep.subr.mxu0 0.0
        %1385 = vmatpush1.msra.mxu0 0.0
        %1386 = vmatprep.subr.mxu0 0.0
        %1387 = vmatpush1.msra.mxu0 0.0
        %1388 = vmatprep.subr.mxu0 0.0
        %1389 = vmatpush1.msra.mxu0 0.0
        %1390 = vmatprep.subr.mxu0 0.0
        %1391 = vmatpush1.msra.mxu0 0.0
        %1392 = vmatprep.subr.mxu0 0.0
        %1393 = vmatpush1.msra.mxu0 0.0
        %1394 = vmatprep.subr.mxu0 0.0
        %1395 = vmatpush1.msra.mxu0 0.0
        %1396 = vmatprep.subr.mxu0 0.0
        %1397 = vmatpush1.msra.mxu0 0.0
        %1398 = vmatprep.subr.mxu0 0.0
        %1399 = vmatpush1.msra.mxu0 0.0
        %1400 = vmatprep.subr.mxu0 0.0
        %1401 = vmatpush1.msra.mxu0 0.0
        %1402 = vmatprep.mubr.f32.mxu0 0.0
        %1403 = vmatmul.mubr.f32.gmra.mrb[0].mxu0 %v1274
        %v1404 = vpop.f32.mrb[0].mxu0
        %v1405 = vadd.f32 %v771, %v1404
        %v1406 = vpop.f32.mrb[0].mxu0
        %1407 = vmatprep.mubr.f32.mxu0 0.0
        %1408 = vmatmul.mubr.f32.gmra.mrb[0].mxu0 %v1276
        %v1409 = vpop.f32.mrb[0].mxu0
        %v1410 = vadd.f32 %v771, %v1409
        %v1411 = vpop.f32.mrb[0].mxu0
        %1412 = vmatprep.mubr.f32.mxu0 0.0
        %1413 = vmatmul.mubr.f32.gmra.mrb[0].mxu0 %v1278
        %v1414 = vpop.f32.mrb[0].mxu0
        %v1415 = vadd.f32 %v771, %v1414
        %v1416 = vpop.f32.mrb[0].mxu0
        %1417 = vmatprep.mubr.f32.mxu0 0.0
        %1418 = vmatmul.mubr.f32.gmra.mrb[0].mxu0 %v1280
        %v1419 = vpop.f32.mrb[0].mxu0
        %v1420 = vadd.f32 %v771, %v1419
        %v1421 = vpop.f32.mrb[0].mxu0
        %1422 = vmatprep.mubr.f32.mxu0 0.0
        %1423 = vmatmul.mubr.f32.gmra.mrb[0].mxu0 %v1282
        %v1424 = vpop.f32.mrb[0].mxu0
        %v1425 = vadd.f32 %v771, %v1424
        %v1426 = vpop.f32.mrb[0].mxu0
        %1427 = vmatprep.mubr.f32.mxu0 0.0
        %1428 = vmatmul.mubr.f32.gmra.mrb[0].mxu0 %v1284
        %v1429 = vpop.f32.mrb[0].mxu0
        %v1430 = vadd.f32 %v771, %v1429
        %v1431 = vpop.f32.mrb[0].mxu0
        %1432 = vmatprep.mubr.f32.mxu0 0.0
        %1433 = vmatmul.mubr.f32.gmra.mrb[0].mxu0 %v1286
        %v1434 = vpop.f32.mrb[0].mxu0
        %v1435 = vadd.f32 %v771, %v1434
        %v1436 = vpop.f32.mrb[0].mxu0
        %1437 = vmatprep.mubr.f32.mxu0 0.0
        %1438 = vmatmul.mubr.f32.gmra.mrb[0].mxu0 %v1288
        %v1439 = vpop.f32.mrb[0].mxu0
        %v1440 = vadd.f32 %v771, %v1439
        %v1441 = vpop.f32.mrb[0].mxu0
        %1442 = vmatprep.mubr.f32.mxu0 0.0
        %1443 = vmatmul.mubr.f32.gmra.mrb[0].mxu0 %v1290
        %v1444 = vpop.f32.mrb[0].mxu0
        %v1445 = vadd.f32 %v771, %v1444
        %v1446 = vpop.f32.mrb[0].mxu0
        %1447 = vmatprep.mubr.f32.mxu0 0.0
        %1448 = vmatmul.mubr.f32.gmra.mrb[0].mxu0 %v1292
        %v1449 = vpop.f32.mrb[0].mxu0
        %v1450 = vadd.f32 %v771, %v1449
        %v1451 = vpop.f32.mrb[0].mxu0
        %1452 = vmatprep.mubr.f32.mxu0 0.0
        %1453 = vmatmul.mubr.f32.gmra.mrb[0].mxu0 %v1294
        %v1454 = vpop.f32.mrb[0].mxu0
        %v1455 = vadd.f32 %v771, %v1454
        %v1456 = vpop.f32.mrb[0].mxu0
        %1457 = vmatprep.mubr.f32.mxu0 0.0
        %1458 = vmatmul.mubr.f32.gmra.mrb[0].mxu0 %v1296
        %v1459 = vpop.f32.mrb[0].mxu0
        %v1460 = vadd.f32 %v771, %v1459
        %v1461 = vpop.f32.mrb[0].mxu0
        %1462 = vmatprep.mubr.f32.mxu0 0.0
        %1463 = vmatmul.mubr.f32.gmra.mrb[0].mxu0 %v1298
        %v1464 = vpop.f32.mrb[0].mxu0
        %v1465 = vadd.f32 %v771, %v1464
        %v1466 = vpop.f32.mrb[0].mxu0
        %1467 = vmatprep.mubr.f32.mxu0 0.0
        %1468 = vmatmul.mubr.f32.gmra.mrb[0].mxu0 %v1300
        %v1469 = vpop.f32.mrb[0].mxu0
        %v1470 = vadd.f32 %v771, %v1469
        %v1471 = vpop.f32.mrb[0].mxu0
        %1472 = vmatprep.mubr.f32.mxu0 0.0
        %1473 = vmatmul.mubr.f32.gmra.mrb[0].mxu0 %v1302
        %v1474 = vpop.f32.mrb[0].mxu0
        %v1475 = vadd.f32 %v771, %v1474
        %v1476 = vpop.f32.mrb[0].mxu0
        %1477 = vmatprep.mubr.f32.mxu0 0.0
        %1478 = vmatmul.mubr.f32.gmra.mrb[0].mxu0 %v1304
        %v1479 = vpop.f32.mrb[0].mxu0
        %v1480 = vadd.f32 %v771, %v1479
        %v1481 = vpop.f32.mrb[0].mxu0
        %1482 = vmatprep.mubr.f32.mxu0 0.0
        %1483 = vmatmul.mubr.f32.gmra.mrb[0].mxu0 %v1306
        %v1484 = vpop.f32.mrb[0].mxu0
        %v1485 = vadd.f32 %v771, %v1484
        %v1486 = vpop.f32.mrb[0].mxu0
        %1487 = vmatprep.mubr.f32.mxu0 0.0
        %1488 = vmatmul.mubr.f32.gmra.mrb[0].mxu0 %v1308
        %v1489 = vpop.f32.mrb[0].mxu0
        %v1490 = vadd.f32 %v771, %v1489
        %v1491 = vpop.f32.mrb[0].mxu0
        %1492 = vmatprep.mubr.f32.mxu0 0.0
        %1493 = vmatmul.mubr.f32.gmra.mrb[0].mxu0 %v1310
        %v1494 = vpop.f32.mrb[0].mxu0
        %v1495 = vadd.f32 %v771, %v1494
        %v1496 = vpop.f32.mrb[0].mxu0
        %1497 = vmatprep.mubr.f32.mxu0 0.0
        %1498 = vmatmul.mubr.f32.gmra.mrb[0].mxu0 %v1312
        %v1499 = vpop.f32.mrb[0].mxu0
        %v1500 = vadd.f32 %v771, %v1499
        %v1501 = vpop.f32.mrb[0].mxu0
        %1502 = vmatprep.mubr.f32.mxu0 0.0
        %1503 = vmatmul.mubr.f32.gmra.mrb[0].mxu0 %v1314
        %v1504 = vpop.f32.mrb[0].mxu0
        %v1505 = vadd.f32 %v771, %v1504
        %v1506 = vpop.f32.mrb[0].mxu0
        %1507 = vmatprep.mubr.f32.mxu0 0.0
        %1508 = vmatmul.mubr.f32.gmra.mrb[0].mxu0 %v1316
        %v1509 = vpop.f32.mrb[0].mxu0
        %v1510 = vadd.f32 %v771, %v1509
        %v1511 = vpop.f32.mrb[0].mxu0
        %1512 = vmatprep.mubr.f32.mxu0 0.0
        %1513 = vmatmul.mubr.f32.gmra.mrb[0].mxu0 %v1318
        %v1514 = vpop.f32.mrb[0].mxu0
        %v1515 = vadd.f32 %v771, %v1514
        %v1516 = vpop.f32.mrb[0].mxu0
        %1517 = vmatprep.mubr.f32.mxu0 0.0
        %1518 = vmatmul.mubr.f32.gmra.mrb[0].mxu0 %v1320
        %v1519 = vpop.f32.mrb[0].mxu0
        %v1520 = vadd.f32 %v771, %v1519
        %v1521 = vpop.f32.mrb[0].mxu0
        %1522 = vmatprep.mubr.f32.mxu0 0.0
        %1523 = vmatmul.mubr.f32.gmra.mrb[0].mxu0 %v1322
        %v1524 = vpop.f32.mrb[0].mxu0
        %v1525 = vadd.f32 %v771, %v1524
        %v1526 = vpop.f32.mrb[0].mxu0
        %1527 = vmatprep.mubr.f32.mxu0 0.0
        %1528 = vmatmul.mubr.f32.gmra.mrb[0].mxu0 %v1324
        %v1529 = vpop.f32.mrb[0].mxu0
        %v1530 = vadd.f32 %v771, %v1529
        %v1531 = vpop.f32.mrb[0].mxu0
        %1532 = vmatprep.mubr.f32.mxu0 0.0
        %1533 = vmatmul.mubr.f32.gmra.mrb[0].mxu0 %v1326
        %v1534 = vpop.f32.mrb[0].mxu0
        %v1535 = vadd.f32 %v771, %v1534
        %v1536 = vpop.f32.mrb[0].mxu0
        %1537 = vmatprep.mubr.f32.mxu0 0.0
        %1538 = vmatmul.mubr.f32.gmra.mrb[0].mxu0 %v1328
        %v1539 = vpop.f32.mrb[0].mxu0
        %v1540 = vadd.f32 %v771, %v1539
        %v1541 = vpop.f32.mrb[0].mxu0
        %1542 = vmatprep.mubr.f32.mxu0 0.0
        %1543 = vmatmul.mubr.f32.gmra.mrb[0].mxu0 %v1330
        %v1544 = vpop.f32.mrb[0].mxu0
        %v1545 = vadd.f32 %v771, %v1544
        %v1546 = vpop.f32.mrb[0].mxu0
        %1547 = vmatprep.mubr.f32.mxu0 0.0
        %1548 = vmatmul.mubr.f32.gmra.mrb[0].mxu0 %v1332
        %v1549 = vpop.f32.mrb[0].mxu0
        %v1550 = vadd.f32 %v771, %v1549
        %v1551 = vpop.f32.mrb[0].mxu0
        %1552 = vmatprep.mubr.f32.mxu0 0.0
        %1553 = vmatmul.mubr.f32.gmra.mrb[0].mxu0 %v1334
        %v1554 = vpop.f32.mrb[0].mxu0
        %v1555 = vadd.f32 %v771, %v1554
        %v1556 = vpop.f32.mrb[0].mxu0
        %1557 = vmatprep.mubr.f32.mxu0 0.0
        %1558 = vmatmul.mubr.f32.gmra.mrb[0].mxu0 %v1336
        %v1559 = vpop.f32.mrb[0].mxu0
        %v1560 = vadd.f32 %v771, %v1559
        %v1561 = vpop.f32.mrb[0].mxu0
        %1562 = vdwg.mxu0
        %1595 = vrot.lane.b32.xlu0 %v1405, 8
        %v1596 = vpop.permute.xlu0 %1595
        %1597 = vrot.lane.b32.xlu0 %v1410, 8
        %v1598 = vpop.permute.xlu0 %1597
        %1599 = vrot.lane.b32.xlu0 %v1415, 8
        %v1600 = vpop.permute.xlu0 %1599
        %1601 = vrot.lane.b32.xlu0 %v1420, 8
        %v1602 = vpop.permute.xlu0 %1601
        %1603 = vrot.lane.b32.xlu0 %v1425, 8
        %v1604 = vpop.permute.xlu0 %1603
        %1605 = vrot.lane.b32.xlu0 %v1430, 8
        %v1606 = vpop.permute.xlu0 %1605
        %1607 = vrot.lane.b32.xlu0 %v1435, 8
        %v1608 = vpop.permute.xlu0 %1607
        %1609 = vrot.lane.b32.xlu0 %v1440, 8
        %v1610 = vpop.permute.xlu0 %1609
        %1611 = vrot.lane.b32.xlu0 %v1445, 8
        %v1612 = vpop.permute.xlu0 %1611
        %1613 = vrot.lane.b32.xlu0 %v1450, 8
        %v1614 = vpop.permute.xlu0 %1613
        %1615 = vrot.lane.b32.xlu0 %v1455, 8
        %v1616 = vpop.permute.xlu0 %1615
        %1617 = vrot.lane.b32.xlu0 %v1460, 8
        %v1618 = vpop.permute.xlu0 %1617
        %1619 = vrot.lane.b32.xlu0 %v1465, 8
        %v1620 = vpop.permute.xlu0 %1619
        %1621 = vrot.lane.b32.xlu0 %v1470, 8
        %v1622 = vpop.permute.xlu0 %1621
        %1623 = vrot.lane.b32.xlu0 %v1475, 8
        %v1624 = vpop.permute.xlu0 %1623
        %1625 = vrot.lane.b32.xlu0 %v1480, 8
        %v1626 = vpop.permute.xlu0 %1625
        %1627 = vrot.lane.b32.xlu0 %v1485, 8
        %v1628 = vpop.permute.xlu0 %1627
        %1629 = vrot.lane.b32.xlu0 %v1490, 8
        %v1630 = vpop.permute.xlu0 %1629
        %1631 = vrot.lane.b32.xlu0 %v1495, 8
        %v1632 = vpop.permute.xlu0 %1631
        %1633 = vrot.lane.b32.xlu0 %v1500, 8
        %v1634 = vpop.permute.xlu0 %1633
        %1635 = vrot.lane.b32.xlu0 %v1505, 8
        %v1636 = vpop.permute.xlu0 %1635
        %1637 = vrot.lane.b32.xlu0 %v1510, 8
        %v1638 = vpop.permute.xlu0 %1637
        %1639 = vrot.lane.b32.xlu0 %v1515, 8
        %v1640 = vpop.permute.xlu0 %1639
        %1641 = vrot.lane.b32.xlu0 %v1520, 8
        %v1642 = vpop.permute.xlu0 %1641
        %1643 = vrot.lane.b32.xlu0 %v1525, 8
        %v1644 = vpop.permute.xlu0 %1643
        %1645 = vrot.lane.b32.xlu0 %v1530, 8
        %v1646 = vpop.permute.xlu0 %1645
        %1647 = vrot.lane.b32.xlu0 %v1535, 8
        %v1648 = vpop.permute.xlu0 %1647
        %1649 = vrot.lane.b32.xlu0 %v1540, 8
        %v1650 = vpop.permute.xlu0 %1649
        %1651 = vrot.lane.b32.xlu0 %v1545, 8
        %v1652 = vpop.permute.xlu0 %1651
        %1653 = vrot.lane.b32.xlu0 %v1550, 8
        %v1654 = vpop.permute.xlu0 %1653
        %1655 = vrot.lane.b32.xlu0 %v1555, 8
        %v1656 = vpop.permute.xlu0 %1655
        %1657 = vrot.lane.b32.xlu0 %v1560, 8
        %v1658 = vpop.permute.xlu0 %1657
        %v1691 = vsel %vm732, %v937, %v1596
        %v1692 = vsel %vm732, %v942, %v1598
        %v1693 = vsel %vm732, %v947, %v1600
        %v1694 = vsel %vm732, %v952, %v1602
        %v1695 = vsel %vm732, %v957, %v1604
        %v1696 = vsel %vm732, %v962, %v1606
        %v1697 = vsel %vm732, %v967, %v1608
        %v1698 = vsel %vm732, %v972, %v1610
        %v1699 = vsel %vm732, %v977, %v1612
        %v1700 = vsel %vm732, %v982, %v1614
        %v1701 = vsel %vm732, %v987, %v1616
        %v1702 = vsel %vm732, %v992, %v1618
        %v1703 = vsel %vm732, %v997, %v1620
        %v1704 = vsel %vm732, %v1002, %v1622
        %v1705 = vsel %vm732, %v1007, %v1624
        %v1706 = vsel %vm732, %v1012, %v1626
        %v1707 = vsel %vm732, %v1017, %v1628
        %v1708 = vsel %vm732, %v1022, %v1630
        %v1709 = vsel %vm732, %v1027, %v1632
        %v1710 = vsel %vm732, %v1032, %v1634
        %v1711 = vsel %vm732, %v1037, %v1636
        %v1712 = vsel %vm732, %v1042, %v1638
        %v1713 = vsel %vm732, %v1047, %v1640
        %v1714 = vsel %vm732, %v1052, %v1642
        %v1715 = vsel %vm732, %v1057, %v1644
        %v1716 = vsel %vm732, %v1062, %v1646
        %v1717 = vsel %vm732, %v1067, %v1648
        %v1718 = vsel %vm732, %v1072, %v1650
        %v1719 = vsel %vm732, %v1077, %v1652
        %v1720 = vsel %vm732, %v1082, %v1654
        %v1721 = vsel %vm732, %v1087, %v1656
        %v1722 = vsel %vm732, %v1092, %v1658
        %1723 = vst.msk [vmem:[%s177] sm:$0xff] %vm773, %v1691
        %1724 = vst.msk [vmem:[%s177 + $0x8] sm:$0xff] %vm773, %v1692
        %1725 = vst.msk [vmem:[%s177 + $0x20] sm:$0xff] %vm773, %v1693
        %1726 = vst.msk [vmem:[%s177 + $0x28] sm:$0xff] %vm773, %v1694
        %1727 = vst.msk [vmem:[%s177 + $0x40] sm:$0xff] %vm773, %v1695
        %1728 = vst.msk [vmem:[%s177 + $0x48] sm:$0xff] %vm773, %v1696
        %1729 = vst.msk [vmem:[%s177 + $0x60] sm:$0xff] %vm773, %v1697
        %1730 = vst.msk [vmem:[%s177 + $0x68] sm:$0xff] %vm773, %v1698
        %1731 = vst.msk [vmem:[%s177 + $0x80] sm:$0xff] %vm773, %v1699
        %1732 = vst.msk [vmem:[%s177 + $0x88] sm:$0xff] %vm773, %v1700
        %1733 = vst.msk [vmem:[%s177 + $0xa0] sm:$0xff] %vm773, %v1701
        %1734 = vst.msk [vmem:[%s177 + $0xa8] sm:$0xff] %vm773, %v1702
        %1735 = vst.msk [vmem:[%s177 + $0xc0] sm:$0xff] %vm773, %v1703
        %1736 = vst.msk [vmem:[%s177 + $0xc8] sm:$0xff] %vm773, %v1704
        %1737 = vst.msk [vmem:[%s177 + $0xe0] sm:$0xff] %vm773, %v1705
        %1738 = vst.msk [vmem:[%s177 + $0xe8] sm:$0xff] %vm773, %v1706
        %1739 = vst.msk [vmem:[%s177 + $0x100] sm:$0xff] %vm773, %v1707
        %1740 = vst.msk [vmem:[%s177 + $0x108] sm:$0xff] %vm773, %v1708
        %1741 = vst.msk [vmem:[%s177 + $0x120] sm:$0xff] %vm773, %v1709
        %1742 = vst.msk [vmem:[%s177 + $0x128] sm:$0xff] %vm773, %v1710
        %1743 = vst.msk [vmem:[%s177 + $0x140] sm:$0xff] %vm773, %v1711
        %1744 = vst.msk [vmem:[%s177 + $0x148] sm:$0xff] %vm773, %v1712
        %1745 = vst.msk [vmem:[%s177 + $0x160] sm:$0xff] %vm773, %v1713
        %1746 = vst.msk [vmem:[%s177 + $0x168] sm:$0xff] %vm773, %v1714
        %1747 = vst.msk [vmem:[%s177 + $0x180] sm:$0xff] %vm773, %v1715
        %1748 = vst.msk [vmem:[%s177 + $0x188] sm:$0xff] %vm773, %v1716
        %1749 = vst.msk [vmem:[%s177 + $0x1a0] sm:$0xff] %vm773, %v1717
        %1750 = vst.msk [vmem:[%s177 + $0x1a8] sm:$0xff] %vm773, %v1718
        %1751 = vst.msk [vmem:[%s177 + $0x1c0] sm:$0xff] %vm773, %v1719
        %1752 = vst.msk [vmem:[%s177 + $0x1c8] sm:$0xff] %vm773, %v1720
        %1753 = vst.msk [vmem:[%s177 + $0x1e0] sm:$0xff] %vm773, %v1721
        %1754 = vst.msk [vmem:[%s177 + $0x1e8] sm:$0xff] %vm773, %v1722
        %1757 = vrot.lane.b32.xlu0 %v529, 8
        %v1758 = vpop.permute.xlu0 %1757
        %1759 = vrot.lane.b32.xlu0 %v530, 8
        %v1760 = vpop.permute.xlu0 %1759
        %v1763 = vsel %vm732, %v527, %v1758
        %v1764 = vsel %vm732, %v528, %v1760
        %s1765 = scalar_lea.vmem %s1, 16
        %v1766 = vld [vmem:[%s1765] sm:$0xff]
        %v1767 = vld [vmem:[%s1765 + $0x8] sm:$0xff]
        %v1769 = vsel %vm773, %v1763, 0
        %v1772 = vsel %vm773, %v1764, 0
        %1774 = vmatprep.subr.mxu0 0.0
        %1775 = vmatpush1.msra.mxu0 %v1766
        %1776 = vmatprep.subr.mxu0 0.0
        %1777 = vmatpush1.msra.mxu0 %v1767
        %1778 = vmatprep.subr.mxu0 0.0
        %1779 = vmatpush1.msra.mxu0 0.0
        %1780 = vmatprep.subr.mxu0 0.0
        %1781 = vmatpush1.msra.mxu0 0.0
        %1782 = vmatprep.subr.mxu0 0.0
        %1783 = vmatpush1.msra.mxu0 0.0
        %1784 = vmatprep.subr.mxu0 0.0
        %1785 = vmatpush1.msra.mxu0 0.0
        %1786 = vmatprep.subr.mxu0 0.0
        %1787 = vmatpush1.msra.mxu0 0.0
        %1788 = vmatprep.subr.mxu0 0.0
        %1789 = vmatpush1.msra.mxu0 0.0
        %1790 = vmatprep.subr.mxu0 0.0
        %1791 = vmatpush1.msra.mxu0 0.0
        %1792 = vmatprep.subr.mxu0 0.0
        %1793 = vmatpush1.msra.mxu0 0.0
        %1794 = vmatprep.subr.mxu0 0.0
        %1795 = vmatpush1.msra.mxu0 0.0
        %1796 = vmatprep.subr.mxu0 0.0
        %1797 = vmatpush1.msra.mxu0 0.0
        %1798 = vmatprep.subr.mxu0 0.0
        %1799 = vmatpush1.msra.mxu0 0.0
        %1800 = vmatprep.subr.mxu0 0.0
        %1801 = vmatpush1.msra.mxu0 0.0
        %1802 = vmatprep.subr.mxu0 0.0
        %1803 = vmatpush1.msra.mxu0 0.0
        %1804 = vmatprep.subr.mxu0 0.0
        %1805 = vmatpush1.msra.mxu0 0.0
        %1806 = vmatprep.subr.mxu0 0.0
        %1807 = vmatpush1.msra.mxu0 0.0
        %1808 = vmatprep.subr.mxu0 0.0
        %1809 = vmatpush1.msra.mxu0 0.0
        %1810 = vmatprep.subr.mxu0 0.0
        %1811 = vmatpush1.msra.mxu0 0.0
        %1812 = vmatprep.subr.mxu0 0.0
        %1813 = vmatpush1.msra.mxu0 0.0
        %1814 = vmatprep.subr.mxu0 0.0
        %1815 = vmatpush1.msra.mxu0 0.0
        %1816 = vmatprep.subr.mxu0 0.0
        %1817 = vmatpush1.msra.mxu0 0.0
        %1818 = vmatprep.subr.mxu0 0.0
        %1819 = vmatpush1.msra.mxu0 0.0
        %1820 = vmatprep.subr.mxu0 0.0
        %1821 = vmatpush1.msra.mxu0 0.0
        %1822 = vmatprep.subr.mxu0 0.0
        %1823 = vmatpush1.msra.mxu0 0.0
        %1824 = vmatprep.subr.mxu0 0.0
        %1825 = vmatpush1.msra.mxu0 0.0
        %1826 = vmatprep.subr.mxu0 0.0
        %1827 = vmatpush1.msra.mxu0 0.0
        %1828 = vmatprep.subr.mxu0 0.0
        %1829 = vmatpush1.msra.mxu0 0.0
        %1830 = vmatprep.subr.mxu0 0.0
        %1831 = vmatpush1.msra.mxu0 0.0
        %1832 = vmatprep.subr.mxu0 0.0
        %1833 = vmatpush1.msra.mxu0 0.0
        %1834 = vmatprep.subr.mxu0 0.0
        %1835 = vmatpush1.msra.mxu0 0.0
        %1836 = vmatprep.subr.mxu0 0.0
        %1837 = vmatpush1.msra.mxu0 0.0
        %1838 = vmatprep.mubr.f32.mxu0 0.0
        %1839 = vmatmul.mubr.f32.gmra.mrb[0].mxu0 %v781
        %v1840 = vpop.f32.mrb[0].mxu0
        %v1841 = vadd.f32 %v771, %v1840
        %v1842 = vpop.f32.mrb[0].mxu0
        %1843 = vmatprep.mubr.f32.mxu0 0.0
        %1844 = vmatmul.mubr.f32.gmra.mrb[0].mxu0 %v784
        %v1845 = vpop.f32.mrb[0].mxu0
        %v1846 = vadd.f32 %v771, %v1845
        %v1847 = vpop.f32.mrb[0].mxu0
        %1848 = vmatprep.mubr.f32.mxu0 0.0
        %1849 = vmatmul.mubr.f32.gmra.mrb[0].mxu0 %v787
        %v1850 = vpop.f32.mrb[0].mxu0
        %v1851 = vadd.f32 %v771, %v1850
        %v1852 = vpop.f32.mrb[0].mxu0
        %1853 = vmatprep.mubr.f32.mxu0 0.0
        %1854 = vmatmul.mubr.f32.gmra.mrb[0].mxu0 %v790
        %v1855 = vpop.f32.mrb[0].mxu0
        %v1856 = vadd.f32 %v771, %v1855
        %v1857 = vpop.f32.mrb[0].mxu0
        %1858 = vmatprep.mubr.f32.mxu0 0.0
        %1859 = vmatmul.mubr.f32.gmra.mrb[0].mxu0 %v793
        %v1860 = vpop.f32.mrb[0].mxu0
        %v1861 = vadd.f32 %v771, %v1860
        %v1862 = vpop.f32.mrb[0].mxu0
        %1863 = vmatprep.mubr.f32.mxu0 0.0
        %1864 = vmatmul.mubr.f32.gmra.mrb[0].mxu0 %v796
        %v1865 = vpop.f32.mrb[0].mxu0
        %v1866 = vadd.f32 %v771, %v1865
        %v1867 = vpop.f32.mrb[0].mxu0
        %1868 = vmatprep.mubr.f32.mxu0 0.0
        %1869 = vmatmul.mubr.f32.gmra.mrb[0].mxu0 %v799
        %v1870 = vpop.f32.mrb[0].mxu0
        %v1871 = vadd.f32 %v771, %v1870
        %v1872 = vpop.f32.mrb[0].mxu0
        %1873 = vmatprep.mubr.f32.mxu0 0.0
        %1874 = vmatmul.mubr.f32.gmra.mrb[0].mxu0 %v802
        %v1875 = vpop.f32.mrb[0].mxu0
        %v1876 = vadd.f32 %v771, %v1875
        %v1877 = vpop.f32.mrb[0].mxu0
        %1878 = vmatprep.mubr.f32.mxu0 0.0
        %1879 = vmatmul.mubr.f32.gmra.mrb[0].mxu0 %v805
        %v1880 = vpop.f32.mrb[0].mxu0
        %v1881 = vadd.f32 %v771, %v1880
        %v1882 = vpop.f32.mrb[0].mxu0
        %1883 = vmatprep.mubr.f32.mxu0 0.0
        %1884 = vmatmul.mubr.f32.gmra.mrb[0].mxu0 %v808
        %v1885 = vpop.f32.mrb[0].mxu0
        %v1886 = vadd.f32 %v771, %v1885
        %v1887 = vpop.f32.mrb[0].mxu0
        %1888 = vmatprep.mubr.f32.mxu0 0.0
        %1889 = vmatmul.mubr.f32.gmra.mrb[0].mxu0 %v811
        %v1890 = vpop.f32.mrb[0].mxu0
        %v1891 = vadd.f32 %v771, %v1890
        %v1892 = vpop.f32.mrb[0].mxu0
        %1893 = vmatprep.mubr.f32.mxu0 0.0
        %1894 = vmatmul.mubr.f32.gmra.mrb[0].mxu0 %v814
        %v1895 = vpop.f32.mrb[0].mxu0
        %v1896 = vadd.f32 %v771, %v1895
        %v1897 = vpop.f32.mrb[0].mxu0
        %1898 = vmatprep.mubr.f32.mxu0 0.0
        %1899 = vmatmul.mubr.f32.gmra.mrb[0].mxu0 %v817
        %v1900 = vpop.f32.mrb[0].mxu0
        %v1901 = vadd.f32 %v771, %v1900
        %v1902 = vpop.f32.mrb[0].mxu0
        %1903 = vmatprep.mubr.f32.mxu0 0.0
        %1904 = vmatmul.mubr.f32.gmra.mrb[0].mxu0 %v820
        %v1905 = vpop.f32.mrb[0].mxu0
        %v1906 = vadd.f32 %v771, %v1905
        %v1907 = vpop.f32.mrb[0].mxu0
        %1908 = vmatprep.mubr.f32.mxu0 0.0
        %1909 = vmatmul.mubr.f32.gmra.mrb[0].mxu0 %v823
        %v1910 = vpop.f32.mrb[0].mxu0
        %v1911 = vadd.f32 %v771, %v1910
        %v1912 = vpop.f32.mrb[0].mxu0
        %1913 = vmatprep.mubr.f32.mxu0 0.0
        %1914 = vmatmul.mubr.f32.gmra.mrb[0].mxu0 %v826
        %v1915 = vpop.f32.mrb[0].mxu0
        %v1916 = vadd.f32 %v771, %v1915
        %v1917 = vpop.f32.mrb[0].mxu0
        %1918 = vmatprep.mubr.f32.mxu0 0.0
        %1919 = vmatmul.mubr.f32.gmra.mrb[0].mxu0 %v829
        %v1920 = vpop.f32.mrb[0].mxu0
        %v1921 = vadd.f32 %v771, %v1920
        %v1922 = vpop.f32.mrb[0].mxu0
        %1923 = vmatprep.mubr.f32.mxu0 0.0
        %1924 = vmatmul.mubr.f32.gmra.mrb[0].mxu0 %v832
        %v1925 = vpop.f32.mrb[0].mxu0
        %v1926 = vadd.f32 %v771, %v1925
        %v1927 = vpop.f32.mrb[0].mxu0
        %1928 = vmatprep.mubr.f32.mxu0 0.0
        %1929 = vmatmul.mubr.f32.gmra.mrb[0].mxu0 %v835
        %v1930 = vpop.f32.mrb[0].mxu0
        %v1931 = vadd.f32 %v771, %v1930
        %v1932 = vpop.f32.mrb[0].mxu0
        %1933 = vmatprep.mubr.f32.mxu0 0.0
        %1934 = vmatmul.mubr.f32.gmra.mrb[0].mxu0 %v838
        %v1935 = vpop.f32.mrb[0].mxu0
        %v1936 = vadd.f32 %v771, %v1935
        %v1937 = vpop.f32.mrb[0].mxu0
        %1938 = vmatprep.mubr.f32.mxu0 0.0
        %1939 = vmatmul.mubr.f32.gmra.mrb[0].mxu0 %v841
        %v1940 = vpop.f32.mrb[0].mxu0
        %v1941 = vadd.f32 %v771, %v1940
        %v1942 = vpop.f32.mrb[0].mxu0
        %1943 = vmatprep.mubr.f32.mxu0 0.0
        %1944 = vmatmul.mubr.f32.gmra.mrb[0].mxu0 %v844
        %v1945 = vpop.f32.mrb[0].mxu0
        %v1946 = vadd.f32 %v771, %v1945
        %v1947 = vpop.f32.mrb[0].mxu0
        %1948 = vmatprep.mubr.f32.mxu0 0.0
        %1949 = vmatmul.mubr.f32.gmra.mrb[0].mxu0 %v847
        %v1950 = vpop.f32.mrb[0].mxu0
        %v1951 = vadd.f32 %v771, %v1950
        %v1952 = vpop.f32.mrb[0].mxu0
        %1953 = vmatprep.mubr.f32.mxu0 0.0
        %1954 = vmatmul.mubr.f32.gmra.mrb[0].mxu0 %v850
        %v1955 = vpop.f32.mrb[0].mxu0
        %v1956 = vadd.f32 %v771, %v1955
        %v1957 = vpop.f32.mrb[0].mxu0
        %1958 = vmatprep.mubr.f32.mxu0 0.0
        %1959 = vmatmul.mubr.f32.gmra.mrb[0].mxu0 %v853
        %v1960 = vpop.f32.mrb[0].mxu0
        %v1961 = vadd.f32 %v771, %v1960
        %v1962 = vpop.f32.mrb[0].mxu0
        %1963 = vmatprep.mubr.f32.mxu0 0.0
        %1964 = vmatmul.mubr.f32.gmra.mrb[0].mxu0 %v856
        %v1965 = vpop.f32.mrb[0].mxu0
        %v1966 = vadd.f32 %v771, %v1965
        %v1967 = vpop.f32.mrb[0].mxu0
        %1968 = vmatprep.mubr.f32.mxu0 0.0
        %1969 = vmatmul.mubr.f32.gmra.mrb[0].mxu0 %v859
        %v1970 = vpop.f32.mrb[0].mxu0
        %v1971 = vadd.f32 %v771, %v1970
        %v1972 = vpop.f32.mrb[0].mxu0
        %1973 = vmatprep.mubr.f32.mxu0 0.0
        %1974 = vmatmul.mubr.f32.gmra.mrb[0].mxu0 %v862
        %v1975 = vpop.f32.mrb[0].mxu0
        %v1976 = vadd.f32 %v771, %v1975
        %v1977 = vpop.f32.mrb[0].mxu0
        %1978 = vmatprep.mubr.f32.mxu0 0.0
        %1979 = vmatmul.mubr.f32.gmra.mrb[0].mxu0 %v865
        %v1980 = vpop.f32.mrb[0].mxu0
        %v1981 = vadd.f32 %v771, %v1980
        %v1982 = vpop.f32.mrb[0].mxu0
        %1983 = vmatprep.mubr.f32.mxu0 0.0
        %1984 = vmatmul.mubr.f32.gmra.mrb[0].mxu0 %v868
        %v1985 = vpop.f32.mrb[0].mxu0
        %v1986 = vadd.f32 %v771, %v1985
        %v1987 = vpop.f32.mrb[0].mxu0
        %1988 = vmatprep.mubr.f32.mxu0 0.0
        %1989 = vmatmul.mubr.f32.gmra.mrb[0].mxu0 %v1769
        %v1990 = vpop.f32.mrb[0].mxu0
        %v1991 = vadd.f32 %v771, %v1990
        %v1992 = vpop.f32.mrb[0].mxu0
        %1993 = vmatprep.mubr.f32.mxu0 0.0
        %1994 = vmatmul.mubr.f32.gmra.mrb[0].mxu0 %v1772
        %v1995 = vpop.f32.mrb[0].mxu0
        %v1996 = vadd.f32 %v771, %v1995
        %v1997 = vpop.f32.mrb[0].mxu0
        %1998 = vdwg.mxu0
        %2000 = vrot.lane.b32.xlu0 %v602, 8
        %v2001 = vpop.permute.xlu0 %2000
        %v2003 = vsel %vm732, %v601, %v2001
        %v2005 = vrot.slane %v1763, 1
        %v2006 = vrot.slane %v1764, 1
        %v2007 = vsel %vm295, %v2005, %v2006
        %v2008 = vrot.slane %v2003, 1
        %v2009 = vsel %vm295, %v2006, %v2008
        %s2010 = scalar_lea.vmem %s1, 48
        %v2011 = vld [vmem:[%s2010] sm:$0xff]
        %v2012 = vld [vmem:[%s2010 + $0x8] sm:$0xff]
        %v2013 = vsel %vm773, %v2007, 0
        %v2015 = vsel %vm773, %v2009, 0
        %2017 = vmatprep.subr.mxu0 0.0
        %2018 = vmatpush1.msra.mxu0 %v2011
        %2019 = vmatprep.subr.mxu0 0.0
        %2020 = vmatpush1.msra.mxu0 %v2012
        %2021 = vmatprep.subr.mxu0 0.0
        %2022 = vmatpush1.msra.mxu0 0.0
        %2023 = vmatprep.subr.mxu0 0.0
        %2024 = vmatpush1.msra.mxu0 0.0
        %2025 = vmatprep.subr.mxu0 0.0
        %2026 = vmatpush1.msra.mxu0 0.0
        %2027 = vmatprep.subr.mxu0 0.0
        %2028 = vmatpush1.msra.mxu0 0.0
        %2029 = vmatprep.subr.mxu0 0.0
        %2030 = vmatpush1.msra.mxu0 0.0
        %2031 = vmatprep.subr.mxu0 0.0
        %2032 = vmatpush1.msra.mxu0 0.0
        %2033 = vmatprep.subr.mxu0 0.0
        %2034 = vmatpush1.msra.mxu0 0.0
        %2035 = vmatprep.subr.mxu0 0.0
        %2036 = vmatpush1.msra.mxu0 0.0
        %2037 = vmatprep.subr.mxu0 0.0
        %2038 = vmatpush1.msra.mxu0 0.0
        %2039 = vmatprep.subr.mxu0 0.0
        %2040 = vmatpush1.msra.mxu0 0.0
        %2041 = vmatprep.subr.mxu0 0.0
        %2042 = vmatpush1.msra.mxu0 0.0
        %2043 = vmatprep.subr.mxu0 0.0
        %2044 = vmatpush1.msra.mxu0 0.0
        %2045 = vmatprep.subr.mxu0 0.0
        %2046 = vmatpush1.msra.mxu0 0.0
        %2047 = vmatprep.subr.mxu0 0.0
        %2048 = vmatpush1.msra.mxu0 0.0
        %2049 = vmatprep.subr.mxu0 0.0
        %2050 = vmatpush1.msra.mxu0 0.0
        %2051 = vmatprep.subr.mxu0 0.0
        %2052 = vmatpush1.msra.mxu0 0.0
        %2053 = vmatprep.subr.mxu0 0.0
        %2054 = vmatpush1.msra.mxu0 0.0
        %2055 = vmatprep.subr.mxu0 0.0
        %2056 = vmatpush1.msra.mxu0 0.0
        %2057 = vmatprep.subr.mxu0 0.0
        %2058 = vmatpush1.msra.mxu0 0.0
        %2059 = vmatprep.subr.mxu0 0.0
        %2060 = vmatpush1.msra.mxu0 0.0
        %2061 = vmatprep.subr.mxu0 0.0
        %2062 = vmatpush1.msra.mxu0 0.0
        %2063 = vmatprep.subr.mxu0 0.0
        %2064 = vmatpush1.msra.mxu0 0.0
        %2065 = vmatprep.subr.mxu0 0.0
        %2066 = vmatpush1.msra.mxu0 0.0
        %2067 = vmatprep.subr.mxu0 0.0
        %2068 = vmatpush1.msra.mxu0 0.0
        %2069 = vmatprep.subr.mxu0 0.0
        %2070 = vmatpush1.msra.mxu0 0.0
        %2071 = vmatprep.subr.mxu0 0.0
        %2072 = vmatpush1.msra.mxu0 0.0
        %2073 = vmatprep.subr.mxu0 0.0
        %2074 = vmatpush1.msra.mxu0 0.0
        %2075 = vmatprep.subr.mxu0 0.0
        %2076 = vmatpush1.msra.mxu0 0.0
        %2077 = vmatprep.subr.mxu0 0.0
        %2078 = vmatpush1.msra.mxu0 0.0
        %2079 = vmatprep.subr.mxu0 0.0
        %2080 = vmatpush1.msra.mxu0 0.0
        %2081 = vmatprep.mubr.f32.mxu0 0.0
        %2082 = vmatmul.mubr.f32.gmra.mrb[0].mxu0 %v1278
        %v2083 = vpop.f32.mrb[0].mxu0
        %v2084 = vadd.f32 %v771, %v2083
        %v2085 = vpop.f32.mrb[0].mxu0
        %2086 = vmatprep.mubr.f32.mxu0 0.0
        %2087 = vmatmul.mubr.f32.gmra.mrb[0].mxu0 %v1280
        %v2088 = vpop.f32.mrb[0].mxu0
        %v2089 = vadd.f32 %v771, %v2088
        %v2090 = vpop.f32.mrb[0].mxu0
        %2091 = vmatprep.mubr.f32.mxu0 0.0
        %2092 = vmatmul.mubr.f32.gmra.mrb[0].mxu0 %v1282
        %v2093 = vpop.f32.mrb[0].mxu0
        %v2094 = vadd.f32 %v771, %v2093
        %v2095 = vpop.f32.mrb[0].mxu0
        %2096 = vmatprep.mubr.f32.mxu0 0.0
        %2097 = vmatmul.mubr.f32.gmra.mrb[0].mxu0 %v1284
        %v2098 = vpop.f32.mrb[0].mxu0
        %v2099 = vadd.f32 %v771, %v2098
        %v2100 = vpop.f32.mrb[0].mxu0
        %2101 = vmatprep.mubr.f32.mxu0 0.0
        %2102 = vmatmul.mubr.f32.gmra.mrb[0].mxu0 %v1286
        %v2103 = vpop.f32.mrb[0].mxu0
        %v2104 = vadd.f32 %v771, %v2103
        %v2105 = vpop.f32.mrb[0].mxu0
        %2106 = vmatprep.mubr.f32.mxu0 0.0
        %2107 = vmatmul.mubr.f32.gmra.mrb[0].mxu0 %v1288
        %v2108 = vpop.f32.mrb[0].mxu0
        %v2109 = vadd.f32 %v771, %v2108
        %v2110 = vpop.f32.mrb[0].mxu0
        %2111 = vmatprep.mubr.f32.mxu0 0.0
        %2112 = vmatmul.mubr.f32.gmra.mrb[0].mxu0 %v1290
        %v2113 = vpop.f32.mrb[0].mxu0
        %v2114 = vadd.f32 %v771, %v2113
        %v2115 = vpop.f32.mrb[0].mxu0
        %2116 = vmatprep.mubr.f32.mxu0 0.0
        %2117 = vmatmul.mubr.f32.gmra.mrb[0].mxu0 %v1292
        %v2118 = vpop.f32.mrb[0].mxu0
        %v2119 = vadd.f32 %v771, %v2118
        %v2120 = vpop.f32.mrb[0].mxu0
        %2121 = vmatprep.mubr.f32.mxu0 0.0
        %2122 = vmatmul.mubr.f32.gmra.mrb[0].mxu0 %v1294
        %v2123 = vpop.f32.mrb[0].mxu0
        %v2124 = vadd.f32 %v771, %v2123
        %v2125 = vpop.f32.mrb[0].mxu0
        %2126 = vmatprep.mubr.f32.mxu0 0.0
        %2127 = vmatmul.mubr.f32.gmra.mrb[0].mxu0 %v1296
        %v2128 = vpop.f32.mrb[0].mxu0
        %v2129 = vadd.f32 %v771, %v2128
        %v2130 = vpop.f32.mrb[0].mxu0
        %2131 = vmatprep.mubr.f32.mxu0 0.0
        %2132 = vmatmul.mubr.f32.gmra.mrb[0].mxu0 %v1298
        %v2133 = vpop.f32.mrb[0].mxu0
        %v2134 = vadd.f32 %v771, %v2133
        %v2135 = vpop.f32.mrb[0].mxu0
        %2136 = vmatprep.mubr.f32.mxu0 0.0
        %2137 = vmatmul.mubr.f32.gmra.mrb[0].mxu0 %v1300
        %v2138 = vpop.f32.mrb[0].mxu0
        %v2139 = vadd.f32 %v771, %v2138
        %v2140 = vpop.f32.mrb[0].mxu0
        %2141 = vmatprep.mubr.f32.mxu0 0.0
        %2142 = vmatmul.mubr.f32.gmra.mrb[0].mxu0 %v1302
        %v2143 = vpop.f32.mrb[0].mxu0
        %v2144 = vadd.f32 %v771, %v2143
        %v2145 = vpop.f32.mrb[0].mxu0
        %2146 = vmatprep.mubr.f32.mxu0 0.0
        %2147 = vmatmul.mubr.f32.gmra.mrb[0].mxu0 %v1304
        %v2148 = vpop.f32.mrb[0].mxu0
        %v2149 = vadd.f32 %v771, %v2148
        %v2150 = vpop.f32.mrb[0].mxu0
        %2151 = vmatprep.mubr.f32.mxu0 0.0
        %2152 = vmatmul.mubr.f32.gmra.mrb[0].mxu0 %v1306
        %v2153 = vpop.f32.mrb[0].mxu0
        %v2154 = vadd.f32 %v771, %v2153
        %v2155 = vpop.f32.mrb[0].mxu0
        %2156 = vmatprep.mubr.f32.mxu0 0.0
        %2157 = vmatmul.mubr.f32.gmra.mrb[0].mxu0 %v1308
        %v2158 = vpop.f32.mrb[0].mxu0
        %v2159 = vadd.f32 %v771, %v2158
        %v2160 = vpop.f32.mrb[0].mxu0
        %2161 = vmatprep.mubr.f32.mxu0 0.0
        %2162 = vmatmul.mubr.f32.gmra.mrb[0].mxu0 %v1310
        %v2163 = vpop.f32.mrb[0].mxu0
        %v2164 = vadd.f32 %v771, %v2163
        %v2165 = vpop.f32.mrb[0].mxu0
        %2166 = vmatprep.mubr.f32.mxu0 0.0
        %2167 = vmatmul.mubr.f32.gmra.mrb[0].mxu0 %v1312
        %v2168 = vpop.f32.mrb[0].mxu0
        %v2169 = vadd.f32 %v771, %v2168
        %v2170 = vpop.f32.mrb[0].mxu0
        %2171 = vmatprep.mubr.f32.mxu0 0.0
        %2172 = vmatmul.mubr.f32.gmra.mrb[0].mxu0 %v1314
        %v2173 = vpop.f32.mrb[0].mxu0
        %v2174 = vadd.f32 %v771, %v2173
        %v2175 = vpop.f32.mrb[0].mxu0
        %2176 = vmatprep.mubr.f32.mxu0 0.0
        %2177 = vmatmul.mubr.f32.gmra.mrb[0].mxu0 %v1316
        %v2178 = vpop.f32.mrb[0].mxu0
        %v2179 = vadd.f32 %v771, %v2178
        %v2180 = vpop.f32.mrb[0].mxu0
        %2181 = vmatprep.mubr.f32.mxu0 0.0
        %2182 = vmatmul.mubr.f32.gmra.mrb[0].mxu0 %v1318
        %v2183 = vpop.f32.mrb[0].mxu0
        %v2184 = vadd.f32 %v771, %v2183
        %v2185 = vpop.f32.mrb[0].mxu0
        %2186 = vmatprep.mubr.f32.mxu0 0.0
        %2187 = vmatmul.mubr.f32.gmra.mrb[0].mxu0 %v1320
        %v2188 = vpop.f32.mrb[0].mxu0
        %v2189 = vadd.f32 %v771, %v2188
        %v2190 = vpop.f32.mrb[0].mxu0
        %2191 = vmatprep.mubr.f32.mxu0 0.0
        %2192 = vmatmul.mubr.f32.gmra.mrb[0].mxu0 %v1322
        %v2193 = vpop.f32.mrb[0].mxu0
        %v2194 = vadd.f32 %v771, %v2193
        %v2195 = vpop.f32.mrb[0].mxu0
        %2196 = vmatprep.mubr.f32.mxu0 0.0
        %2197 = vmatmul.mubr.f32.gmra.mrb[0].mxu0 %v1324
        %v2198 = vpop.f32.mrb[0].mxu0
        %v2199 = vadd.f32 %v771, %v2198
        %v2200 = vpop.f32.mrb[0].mxu0
        %2201 = vmatprep.mubr.f32.mxu0 0.0
        %2202 = vmatmul.mubr.f32.gmra.mrb[0].mxu0 %v1326
        %v2203 = vpop.f32.mrb[0].mxu0
        %v2204 = vadd.f32 %v771, %v2203
        %v2205 = vpop.f32.mrb[0].mxu0
        %2206 = vmatprep.mubr.f32.mxu0 0.0
        %2207 = vmatmul.mubr.f32.gmra.mrb[0].mxu0 %v1328
        %v2208 = vpop.f32.mrb[0].mxu0
        %v2209 = vadd.f32 %v771, %v2208
        %v2210 = vpop.f32.mrb[0].mxu0
        %2211 = vmatprep.mubr.f32.mxu0 0.0
        %2212 = vmatmul.mubr.f32.gmra.mrb[0].mxu0 %v1330
        %v2213 = vpop.f32.mrb[0].mxu0
        %v2214 = vadd.f32 %v771, %v2213
        %v2215 = vpop.f32.mrb[0].mxu0
        %2216 = vmatprep.mubr.f32.mxu0 0.0
        %2217 = vmatmul.mubr.f32.gmra.mrb[0].mxu0 %v1332
        %v2218 = vpop.f32.mrb[0].mxu0
        %v2219 = vadd.f32 %v771, %v2218
        %v2220 = vpop.f32.mrb[0].mxu0
        %2221 = vmatprep.mubr.f32.mxu0 0.0
        %2222 = vmatmul.mubr.f32.gmra.mrb[0].mxu0 %v1334
        %v2223 = vpop.f32.mrb[0].mxu0
        %v2224 = vadd.f32 %v771, %v2223
        %v2225 = vpop.f32.mrb[0].mxu0
        %2226 = vmatprep.mubr.f32.mxu0 0.0
        %2227 = vmatmul.mubr.f32.gmra.mrb[0].mxu0 %v1336
        %v2228 = vpop.f32.mrb[0].mxu0
        %v2229 = vadd.f32 %v771, %v2228
        %v2230 = vpop.f32.mrb[0].mxu0
        %2231 = vmatprep.mubr.f32.mxu0 0.0
        %2232 = vmatmul.mubr.f32.gmra.mrb[0].mxu0 %v2013
        %v2233 = vpop.f32.mrb[0].mxu0
        %v2234 = vadd.f32 %v771, %v2233
        %v2235 = vpop.f32.mrb[0].mxu0
        %2236 = vmatprep.mubr.f32.mxu0 0.0
        %2237 = vmatmul.mubr.f32.gmra.mrb[0].mxu0 %v2015
        %v2238 = vpop.f32.mrb[0].mxu0
        %v2239 = vadd.f32 %v771, %v2238
        %v2240 = vpop.f32.mrb[0].mxu0
        %2241 = vdwg.mxu0
        %2274 = vrot.lane.b32.xlu0 %v2084, 8
        %v2275 = vpop.permute.xlu0 %2274
        %2276 = vrot.lane.b32.xlu0 %v2089, 8
        %v2277 = vpop.permute.xlu0 %2276
        %2278 = vrot.lane.b32.xlu0 %v2094, 8
        %v2279 = vpop.permute.xlu0 %2278
        %2280 = vrot.lane.b32.xlu0 %v2099, 8
        %v2281 = vpop.permute.xlu0 %2280
        %2282 = vrot.lane.b32.xlu0 %v2104, 8
        %v2283 = vpop.permute.xlu0 %2282
        %2284 = vrot.lane.b32.xlu0 %v2109, 8
        %v2285 = vpop.permute.xlu0 %2284
        %2286 = vrot.lane.b32.xlu0 %v2114, 8
        %v2287 = vpop.permute.xlu0 %2286
        %2288 = vrot.lane.b32.xlu0 %v2119, 8
        %v2289 = vpop.permute.xlu0 %2288
        %2290 = vrot.lane.b32.xlu0 %v2124, 8
        %v2291 = vpop.permute.xlu0 %2290
        %2292 = vrot.lane.b32.xlu0 %v2129, 8
        %v2293 = vpop.permute.xlu0 %2292
        %2294 = vrot.lane.b32.xlu0 %v2134, 8
        %v2295 = vpop.permute.xlu0 %2294
        %2296 = vrot.lane.b32.xlu0 %v2139, 8
        %v2297 = vpop.permute.xlu0 %2296
        %2298 = vrot.lane.b32.xlu0 %v2144, 8
        %v2299 = vpop.permute.xlu0 %2298
        %2300 = vrot.lane.b32.xlu0 %v2149, 8
        %v2301 = vpop.permute.xlu0 %2300
        %2302 = vrot.lane.b32.xlu0 %v2154, 8
        %v2303 = vpop.permute.xlu0 %2302
        %2304 = vrot.lane.b32.xlu0 %v2159, 8
        %v2305 = vpop.permute.xlu0 %2304
        %2306 = vrot.lane.b32.xlu0 %v2164, 8
        %v2307 = vpop.permute.xlu0 %2306
        %2308 = vrot.lane.b32.xlu0 %v2169, 8
        %v2309 = vpop.permute.xlu0 %2308
        %2310 = vrot.lane.b32.xlu0 %v2174, 8
        %v2311 = vpop.permute.xlu0 %2310
        %2312 = vrot.lane.b32.xlu0 %v2179, 8
        %v2313 = vpop.permute.xlu0 %2312
        %2314 = vrot.lane.b32.xlu0 %v2184, 8
        %v2315 = vpop.permute.xlu0 %2314
        %2316 = vrot.lane.b32.xlu0 %v2189, 8
        %v2317 = vpop.permute.xlu0 %2316
        %2318 = vrot.lane.b32.xlu0 %v2194, 8
        %v2319 = vpop.permute.xlu0 %2318
        %2320 = vrot.lane.b32.xlu0 %v2199, 8
        %v2321 = vpop.permute.xlu0 %2320
        %2322 = vrot.lane.b32.xlu0 %v2204, 8
        %v2323 = vpop.permute.xlu0 %2322
        %2324 = vrot.lane.b32.xlu0 %v2209, 8
        %v2325 = vpop.permute.xlu0 %2324
        %2326 = vrot.lane.b32.xlu0 %v2214, 8
        %v2327 = vpop.permute.xlu0 %2326
        %2328 = vrot.lane.b32.xlu0 %v2219, 8
        %v2329 = vpop.permute.xlu0 %2328
        %2330 = vrot.lane.b32.xlu0 %v2224, 8
        %v2331 = vpop.permute.xlu0 %2330
        %2332 = vrot.lane.b32.xlu0 %v2229, 8
        %v2333 = vpop.permute.xlu0 %2332
        %2334 = vrot.lane.b32.xlu0 %v2234, 8
        %v2335 = vpop.permute.xlu0 %2334
        %2336 = vrot.lane.b32.xlu0 %v2239, 8
        %v2337 = vpop.permute.xlu0 %2336
        %v2370 = vsel %vm732, %v1841, %v2275
        %v2371 = vsel %vm732, %v1846, %v2277
        %v2372 = vsel %vm732, %v1851, %v2279
        %v2373 = vsel %vm732, %v1856, %v2281
        %v2374 = vsel %vm732, %v1861, %v2283
        %v2375 = vsel %vm732, %v1866, %v2285
        %v2376 = vsel %vm732, %v1871, %v2287
        %v2377 = vsel %vm732, %v1876, %v2289
        %v2378 = vsel %vm732, %v1881, %v2291
        %v2379 = vsel %vm732, %v1886, %v2293
        %v2380 = vsel %vm732, %v1891, %v2295
        %v2381 = vsel %vm732, %v1896, %v2297
        %v2382 = vsel %vm732, %v1901, %v2299
        %v2383 = vsel %vm732, %v1906, %v2301
        %v2384 = vsel %vm732, %v1911, %v2303
        %v2385 = vsel %vm732, %v1916, %v2305
        %v2386 = vsel %vm732, %v1921, %v2307
        %v2387 = vsel %vm732, %v1926, %v2309
        %v2388 = vsel %vm732, %v1931, %v2311
        %v2389 = vsel %vm732, %v1936, %v2313
        %v2390 = vsel %vm732, %v1941, %v2315
        %v2391 = vsel %vm732, %v1946, %v2317
        %v2392 = vsel %vm732, %v1951, %v2319
        %v2393 = vsel %vm732, %v1956, %v2321
        %v2394 = vsel %vm732, %v1961, %v2323
        %v2395 = vsel %vm732, %v1966, %v2325
        %v2396 = vsel %vm732, %v1971, %v2327
        %v2397 = vsel %vm732, %v1976, %v2329
        %v2398 = vsel %vm732, %v1981, %v2331
        %v2399 = vsel %vm732, %v1986, %v2333
        %v2400 = vsel %vm732, %v1991, %v2335
        %v2401 = vsel %vm732, %v1996, %v2337
        %s2402 = scalar_lea.vmem %s177, 16 [#allocation2]
        %2403 = vst.msk [vmem:[%s2402] sm:$0xff] %vm773, %v2370
        %2404 = vst.msk [vmem:[%s2402 + $0x8] sm:$0xff] %vm773, %v2371
        %2405 = vst.msk [vmem:[%s2402 + $0x20] sm:$0xff] %vm773, %v2372
        %2406 = vst.msk [vmem:[%s2402 + $0x28] sm:$0xff] %vm773, %v2373
        %2407 = vst.msk [vmem:[%s2402 + $0x40] sm:$0xff] %vm773, %v2374
        %2408 = vst.msk [vmem:[%s2402 + $0x48] sm:$0xff] %vm773, %v2375
        %2409 = vst.msk [vmem:[%s2402 + $0x60] sm:$0xff] %vm773, %v2376
        %2410 = vst.msk [vmem:[%s2402 + $0x68] sm:$0xff] %vm773, %v2377
        %2411 = vst.msk [vmem:[%s2402 + $0x80] sm:$0xff] %vm773, %v2378
        %2412 = vst.msk [vmem:[%s2402 + $0x88] sm:$0xff] %vm773, %v2379
        %2413 = vst.msk [vmem:[%s2402 + $0xa0] sm:$0xff] %vm773, %v2380
        %2414 = vst.msk [vmem:[%s2402 + $0xa8] sm:$0xff] %vm773, %v2381
        %2415 = vst.msk [vmem:[%s2402 + $0xc0] sm:$0xff] %vm773, %v2382
        %2416 = vst.msk [vmem:[%s2402 + $0xc8] sm:$0xff] %vm773, %v2383
        %2417 = vst.msk [vmem:[%s2402 + $0xe0] sm:$0xff] %vm773, %v2384
        %2418 = vst.msk [vmem:[%s2402 + $0xe8] sm:$0xff] %vm773, %v2385
        %2419 = vst.msk [vmem:[%s2402 + $0x100] sm:$0xff] %vm773, %v2386
        %2420 = vst.msk [vmem:[%s2402 + $0x108] sm:$0xff] %vm773, %v2387
        %2421 = vst.msk [vmem:[%s2402 + $0x120] sm:$0xff] %vm773, %v2388
        %2422 = vst.msk [vmem:[%s2402 + $0x128] sm:$0xff] %vm773, %v2389
        %2423 = vst.msk [vmem:[%s2402 + $0x140] sm:$0xff] %vm773, %v2390
        %2424 = vst.msk [vmem:[%s2402 + $0x148] sm:$0xff] %vm773, %v2391
        %2425 = vst.msk [vmem:[%s2402 + $0x160] sm:$0xff] %vm773, %v2392
        %2426 = vst.msk [vmem:[%s2402 + $0x168] sm:$0xff] %vm773, %v2393
        %2427 = vst.msk [vmem:[%s2402 + $0x180] sm:$0xff] %vm773, %v2394
        %2428 = vst.msk [vmem:[%s2402 + $0x188] sm:$0xff] %vm773, %v2395
        %2429 = vst.msk [vmem:[%s2402 + $0x1a0] sm:$0xff] %vm773, %v2396
        %2430 = vst.msk [vmem:[%s2402 + $0x1a8] sm:$0xff] %vm773, %v2397
        %2431 = vst.msk [vmem:[%s2402 + $0x1c0] sm:$0xff] %vm773, %v2398
        %2432 = vst.msk [vmem:[%s2402 + $0x1c8] sm:$0xff] %vm773, %v2399
        %2433 = vst.msk [vmem:[%s2402 + $0x1e0] sm:$0xff] %vm773, %v2400
        %2434 = vst.msk [vmem:[%s2402 + $0x1e8] sm:$0xff] %vm773, %v2401
        %s2435 = sand.u32 %s107, 1
        %s2436 = scalar_lea.sflag [#allocation3], %s2435
        %s2437 = sand.u32 %s107, 1
        %s2438 = smul.addr %s2437, 512
        %s2439 = scalar_lea.vmem [#allocation2], %s2438
        // Predicated region
        $region33: #{tpu_custom_call.1} parent=31 // pred_check
          %p2440 = pneg %p117
        $region34: #{tpu_custom_call.1} parent=31 // pred_check_branch
          %2442 = sbr.rel (%p2440) target = $region36
        $region35: #{tpu_custom_call.1} parent=31 // pred_region
          %s2443 = smul.u32 16, %s22
          %s2445 = ssub.s32 8192, 8192
          %2446 = vsyncadd %s2436, %s2445
          %s2447 = smul.addr %s2443, 4
          %s2448 = smul.addr %s21, 64
          %s2449 = sadd.s32 %s2447, %s2448
          %s2450 = smul.addr %s2449, 128
          %s2451 = scalar_lea.hbm %s3, %s2450
          %s2452 = sshll.u32 %s2439, 4
          %s2453 = int_to_ptr.vmem [resolvable:$true] %s2452
          %2458 = dma.vmem_to_hbm [thread:$0]  %s2453, 8192, %s2451, %s2436, 128, 128, 8
        $region36: #{tpu_custom_call.1} parent=31 // pred_fallthru
          _
      $region32: #{tpu_custom_call.1} parent=5 // pred_fallthru
        _
      %p2459 = scmp.le.s32.totalorder 2, %s12
      // Predicated region
      $region37: #{tpu_custom_call.1} parent=5 // pred_check
        %p2460 = pneg %p2459
      $region38: #{tpu_custom_call.1} parent=5 // pred_check_branch
        %2462 = sbr.rel (%p2460) target = $region40
      $region39: #{tpu_custom_call.1} parent=5 // pred_region
        %s2463 = ssub.s32 %s12, 2
        // Predicated region
        $region41: #{tpu_custom_call.1} parent=39 // pred_check
          %p2464 = pneg %p123
        $region42: #{tpu_custom_call.1} parent=39 // pred_check_branch
          %2466 = sbr.rel (%p2464) target = $region44
        $region43: #{tpu_custom_call.1} parent=39 // pred_region
          %s2467 = sand.u32 %s108, 1
          %s2468 = scalar_lea.sflag [#allocation3], %s2467
          %s2469 = sand.u32 %s108, 1
          %s2470 = smul.addr %s2469, 512
          %s2471 = scalar_lea.vmem [#allocation2], %s2470
          %2472 = dma.done %s2468, 8192
        $region44: #{tpu_custom_call.1} parent=39 // pred_fallthru
          _
      $region40: #{tpu_custom_call.1} parent=5 // pred_fallthru
        _
    $region6: #{tpu_custom_call.1} parent=1 // loop_footer
      %s16 = sadd.s32 1, %s12
    $region7: #{tpu_custom_call.1} parent=1 // loop_footer_branch
      %11 = sbr.rel target = $region3
    $region8: #{tpu_custom_call.1} parent=1 // loop_exit
      _
    %2473 = vsyncpa [#allocation3], 1
    %s2474 = scalar_lea.sflag [#allocation3], 1
    %2475 = vsyncpa %s2474, 1

</llo_original>
